<compile_context>
chip_gen: v5e
topology: v5e:2x2
jax: 0.10.0
libtpu: 0.0.40
codegen_flags: <defaults>
</compile_context>

<pallas_src>
import functools
import math

import jax
import jax.numpy as jnp
import numpy as np
from jax import lax
from jax.experimental import pallas as pl
from jax.experimental.pallas import tpu as pltpu


# ----------------------------------------------------------------------------
# Fused kernel
# ----------------------------------------------------------------------------
def lenet_fused_kernel(x_ref,
                       a1_ref, b1_ref, p1e_ref, p1o_ref,
                       a2_ref, b2_ref, p2e_ref, p2o_ref,
                       w1_ref, fb1_ref, w2_ref, fb2_ref, w3_ref, fb3_ref,
                       o_ref):
    f32 = jnp.float32
    n = x_ref.shape[0]

    # input ReLU, applied once
    x = jnp.maximum(x_ref[...], 0.0)                       # (N, 28, 28)

    # ---- conv1 (1->6, 5x5, valid) + bias + relu ----------------------------
    acc1 = None
    for i in range(5):
        piece = x[:, i:i + 24, :].reshape(n * 24, 28)      # rows (n, oh)
        term = jnp.dot(piece, a1_ref[i], preferred_element_type=f32)
        acc1 = term if acc1 is None else acc1 + term
    y1 = jnp.maximum(acc1 + b1_ref[...], 0.0)              # (N*24, 144)  lanes (ow, c)

    # ---- pool1 (2x2 max): lane even/odd via selection matmuls, rows via reshape
    wmax1 = jnp.maximum(jnp.dot(y1, p1e_ref[...], preferred_element_type=f32),
                        jnp.dot(y1, p1o_ref[...], preferred_element_type=f32))
    t1 = wmax1.reshape(n * 12, 2, 72)
    z1 = jnp.maximum(t1[:, 0, :], t1[:, 1, :])             # (N*12, 72)
    z1 = z1.reshape(n, 12, 72)

    # ---- conv2 (6->16, 5x5, valid) + bias + relu ---------------------------
    acc2 = None
    for i in range(5):
        piece = z1[:, i:i + 8, :].reshape(n * 8, 72)       # rows (n, oh2)
        term = jnp.dot(piece, a2_ref[i], preferred_element_type=f32)
        acc2 = term if acc2 is None else acc2 + term
    y2 = jnp.maximum(acc2 + b2_ref[...], 0.0)              # (N*8, 128)  lanes (ow2, c)

    # ---- pool2 (2x2 max) ---------------------------------------------------
    wmax2 = jnp.maximum(jnp.dot(y2, p2e_ref[...], preferred_element_type=f32),
                        jnp.dot(y2, p2o_ref[...], preferred_element_type=f32))
    t2 = wmax2.reshape(n * 4, 2, 64)
    z2 = jnp.maximum(t2[:, 0, :], t2[:, 1, :])             # (N*4, 64)
    z2 = z2.reshape(n, 4, 64)

    # ---- fc1 (torch.flatten permutation folded into w1_ref) + relu ---------
    acc3 = None
    for h in range(4):
        term = jnp.dot(z2[:, h, :], w1_ref[h * 64:(h + 1) * 64, :],
                       preferred_element_type=f32)
        acc3 = term if acc3 is None else acc3 + term
    h1 = jnp.maximum(acc3 + fb1_ref[...], 0.0)             # (N, 120)

    # ---- fc2 + relu, fc3 ----------------------------------------------------
    h2 = jnp.maximum(jnp.dot(h1, w2_ref[...], preferred_element_type=f32)
                     + fb2_ref[...], 0.0)                  # (N, 84)
    o_ref[...] = (jnp.dot(h2, w3_ref[...], preferred_element_type=f32)
                  + fb3_ref[...])                          # (N, 10)


# ----------------------------------------------------------------------------
# One-time weight preparation (init-time glue, not on the per-call hot path)
# ----------------------------------------------------------------------------
def _even_odd_selectors(n_in, n_out, channels):
    """0/1 matrices selecting even / odd column groups: (n_in*ch, n_out*ch)."""
    s_e = np.zeros((n_in, n_out), np.float32)
    s_o = np.zeros((n_in, n_out), np.float32)
    s_e[2 * np.arange(n_out), np.arange(n_out)] = 1.0
    s_o[2 * np.arange(n_out) + 1, np.arange(n_out)] = 1.0
    eye = np.eye(channels, dtype=np.float32)
    return jnp.asarray(np.kron(s_e, eye)), jnp.asarray(np.kron(s_o, eye))


def prepare_kernel_params(p):
    f32 = jnp.float32

    # conv1 -> A1[i]: (28, 24*6) with A1[i][w_in, ow*6+o] = w1[o,0,i,w_in-ow]
    w1 = p["conv1_w"].astype(f32)                          # (6,1,5,5)
    w_in = np.arange(28)[:, None]
    ow = np.arange(24)[None, :]
    j1 = w_in - ow
    valid1 = (j1 >= 0) & (j1 < 5)
    jc1 = np.clip(j1, 0, 4)
    w1g = jnp.transpose(w1[:, 0, :, :], (1, 2, 0))         # (i, j, o)
    a1 = w1g[:, jc1, :]                                     # (5, 28, 24, 6)
    a1 = jnp.where(jnp.asarray(valid1)[None, :, :, None], a1, 0.0)
    a1 = a1.reshape(5, 28, 144)
    b1 = jnp.tile(p["conv1_b"].astype(f32), 24).reshape(1, 144)

    # conv2 -> A2[i]: (12*6, 8*16) with A2[i][pw*6+c, ow2*16+o] = w2[o,c,i,pw-ow2]
    w2 = p["conv2_w"].astype(f32)                          # (16,6,5,5)
    pw = np.arange(12)[:, None]
    ow2 = np.arange(8)[None, :]
    j2 = pw - ow2
    valid2 = (j2 >= 0) & (j2 < 5)
    jc2 = np.clip(j2, 0, 4)
    w2g = jnp.transpose(w2, (2, 1, 3, 0))                  # (i, c, j, o)
    a2 = w2g[:, :, jc2, :]                                  # (5, 6, 12, 8, 16)
    a2 = jnp.where(jnp.asarray(valid2)[None, None, :, :, None], a2, 0.0)
    a2 = jnp.transpose(a2, (0, 2, 1, 3, 4)).reshape(5, 72, 128)
    b2 = jnp.tile(p["conv2_b"].astype(f32), 8).reshape(1, 128)

    # exact 0/1 pooling selectors
    p1e, p1o = _even_odd_selectors(24, 12, 6)              # (144, 72)
    p2e, p2o = _even_odd_selectors(8, 4, 16)               # (128, 64)

    # fc1: kernel row index = h*64 + w*16 + c ; torch flat index = c*16 + h*4 + w
    rows = np.arange(256)
    h_ = rows // 64
    w_ = (rows % 64) // 16
    c_ = rows % 16
    flat_src = c_ * 16 + h_ * 4 + w_
    w1p = jnp.transpose(p["fc1_w"].astype(f32))[jnp.asarray(flat_src), :]   # (256,120)
    fb1 = p["fc1_b"].astype(f32).reshape(1, 120)

    w2t = jnp.transpose(p["fc2_w"].astype(f32))            # (120, 84)
    fb2 = p["fc2_b"].astype(f32).reshape(1, 84)
    w3t = jnp.transpose(p["fc3_w"].astype(f32))            # (84, 10)
    fb3 = p["fc3_b"].astype(f32).reshape(1, 10)

    return dict(a1=a1, b1=b1, p1e=p1e, p1o=p1o, a2=a2, b2=b2, p2e=p2e, p2o=p2o,
                w1=w1p, fb1=fb1, w2=w2t, fb2=fb2, w3=w3t, fb3=fb3)


# ----------------------------------------------------------------------------
# Forward wrapper: one fused pallas_call, everything whole-array in VMEM
# ----------------------------------------------------------------------------
@jax.jit
def cnn_forward(x_nchw, kp):
    n = x_nchw.shape[0]
    # C=1, so NCHW -> (N, 28, 28) is a pure reshape (no transpose/copy needed).
    x = x_nchw.reshape(n, 28, 28).astype(jnp.float32)
    args = (x, kp["a1"], kp["b1"], kp["p1e"], kp["p1o"],
            kp["a2"], kp["b2"], kp["p2e"], kp["p2o"],
            kp["w1"], kp["fb1"], kp["w2"], kp["fb2"], kp["w3"], kp["fb3"])
    vmem_spec = functools.partial(pl.BlockSpec, memory_space=pltpu.MemorySpace.VMEM)
    return pl.pallas_call(
        lenet_fused_kernel,
        out_shape=jax.ShapeDtypeStruct((n, 10), jnp.float32),
        in_specs=[vmem_spec() for _ in args],
        out_specs=vmem_spec(),
    )(*args)


# ----------------------------------------------------------------------------
# Params (PyTorch-default-style init) and pure-JAX reference
# ----------------------------------------------------------------------------
def init_params(key):
    def uni(k, shape, fan_in):
        bound = 1.0 / math.sqrt(fan_in)
        return jax.random.uniform(k, shape, jnp.float32, -bound, bound)

    ks = jax.random.split(key, 10)
    return {
        "conv1_w": uni(ks[0], (6, 1, 5, 5), 25),
        "conv1_b": uni(ks[1], (6,), 25),
        "conv2_w": uni(ks[2], (16, 6, 5, 5), 150),
        "conv2_b": uni(ks[3], (16,), 150),
        "fc1_w": uni(ks[4], (120, 256), 256),
        "fc1_b": uni(ks[5], (120,), 256),
        "fc2_w": uni(ks[6], (84, 120), 120),
        "fc2_b": uni(ks[7], (84,), 120),
        "fc3_w": uni(ks[8], (10, 84), 84),
        "fc3_b": uni(ks[9], (10,), 84),
    }


def ref_forward(x, p):
    relu = lambda t: jnp.maximum(t, 0.0)

    def conv(x, w, b):
        y = lax.conv_general_dilated(
            x, w, (1, 1), "VALID",
            dimension_numbers=("NCHW", "OIHW", "NCHW"))
        return y + b[None, :, None, None]

    def pool(x):
        return lax.reduce_window(x, -jnp.inf, lax.max,
                                 (1, 1, 2, 2), (1, 1, 2, 2), "VALID")

    x = relu(x)
    x = relu(conv(x, p["conv1_w"], p["conv1_b"]))
    x = pool(x)
    x = pool(relu(conv(x, p["conv2_w"], p["conv2_b"])))
    x = x.reshape(x.shape[0], -1)
    x = relu(x @ p["fc1_w"].T + p["fc1_b"])
    x = relu(x @ p["fc2_w"].T + p["fc2_b"])
    x = x @ p["fc3_w"].T + p["fc3_b"]
    return x


if __name__ == "__main__":
    key = jax.random.PRNGKey(0)
    k_params, k_x = jax.random.split(key)
    params = init_params(k_params)
    kparams = prepare_kernel_params(params)          # one-time weight lowering
    # fc1 expects 256 = 16*4*4  =>  input is (N, 1, 28, 28)
    x = jax.random.normal(k_x, (2, 1, 28, 28), dtype=jnp.float32)

    out = jax.block_until_ready(cnn_forward(x, kparams))
    ref = jax.block_until_ready(ref_forward(x, params))
    np.testing.assert_allclose(np.asarray(out), np.asarray(ref), atol=1e-4, rtol=1e-4)

    assert out.shape == (2, 10) and out.dtype == jnp.float32
    print("KERNEL_OK")
</pallas_src>

<mosaic_0001>
module attributes {stable_mosaic.version = 11 : i64} {
  func.func @lenet_fused_kernel(%arg0: memref<2x28x28xf32, #tpu.memory_space<vmem>>, %arg1: memref<5x28x144xf32, #tpu.memory_space<vmem>>, %arg2: memref<1x144xf32, #tpu.memory_space<vmem>>, %arg3: memref<144x72xf32, #tpu.memory_space<vmem>>, %arg4: memref<144x72xf32, #tpu.memory_space<vmem>>, %arg5: memref<5x72x128xf32, #tpu.memory_space<vmem>>, %arg6: memref<1x128xf32, #tpu.memory_space<vmem>>, %arg7: memref<128x64xf32, #tpu.memory_space<vmem>>, %arg8: memref<128x64xf32, #tpu.memory_space<vmem>>, %arg9: memref<256x120xf32, #tpu.memory_space<vmem>>, %arg10: memref<1x120xf32, #tpu.memory_space<vmem>>, %arg11: memref<120x84xf32, #tpu.memory_space<vmem>>, %arg12: memref<1x84xf32, #tpu.memory_space<vmem>>, %arg13: memref<84x10xf32, #tpu.memory_space<vmem>>, %arg14: memref<1x10xf32, #tpu.memory_space<vmem>>, %arg15: memref<2x10xf32, #tpu.memory_space<vmem>>) attributes {dimension_semantics = [], scalar_prefetch = 0 : i64, scratch_operands = 0 : i64, tpu.core_type = #tpu.core_type<tc>} {
    %c0 = arith.constant 0 : index
    %c0_0 = arith.constant 0 : index
    %c0_1 = arith.constant 0 : index
    %0 = vector.load %arg0[%c0, %c0_0, %c0_1] : memref<2x28x28xf32, #tpu.memory_space<vmem>>, vector<2x28x28xf32>
    %cst = arith.constant 0.000000e+00 : f32
    %1 = vector.broadcast %cst : f32 to vector<2x28x28xf32>
    %2 = arith.maximumf %0, %1 : vector<2x28x28xf32>
    %3 = vector.extract_strided_slice %2 {offsets = [0, 0, 0], sizes = [2, 24, 28], strides = [1, 1, 1]} : vector<2x28x28xf32> to vector<2x24x28xf32>
    %4 = vector.shape_cast %3 : vector<2x24x28xf32> to vector<48x28xf32>
    %c0_2 = arith.constant 0 : index
    %c0_3 = arith.constant 0 : index
    %c0_4 = arith.constant 0 : index
    %5 = vector.load %arg1[%c0_2, %c0_3, %c0_4] : memref<5x28x144xf32, #tpu.memory_space<vmem>>, vector<1x28x144xf32>
    %6 = vector.shape_cast %5 : vector<1x28x144xf32> to vector<28x144xf32>
    %cst_5 = arith.constant dense<0.000000e+00> : vector<48x144xf32>
    %7 = tpu.matmul %4, %6, %cst_5 {dimension_numbers = #tpu.dot_dimension_numbers<[1], [0], [0], [1], [0, 0, 1, 1], [], []>} : vector<48x28xf32>, vector<28x144xf32>, vector<48x144xf32> -> vector<48x144xf32>
    %8 = vector.extract_strided_slice %2 {offsets = [0, 1, 0], sizes = [2, 24, 28], strides = [1, 1, 1]} : vector<2x28x28xf32> to vector<2x24x28xf32>
    %9 = vector.shape_cast %8 : vector<2x24x28xf32> to vector<48x28xf32>
    %c1 = arith.constant 1 : index
    %c0_6 = arith.constant 0 : index
    %c0_7 = arith.constant 0 : index
    %10 = vector.load %arg1[%c1, %c0_6, %c0_7] : memref<5x28x144xf32, #tpu.memory_space<vmem>>, vector<1x28x144xf32>
    %11 = vector.shape_cast %10 : vector<1x28x144xf32> to vector<28x144xf32>
    %cst_8 = arith.constant dense<0.000000e+00> : vector<48x144xf32>
    %12 = tpu.matmul %9, %11, %cst_8 {dimension_numbers = #tpu.dot_dimension_numbers<[1], [0], [0], [1], [0, 0, 1, 1], [], []>} : vector<48x28xf32>, vector<28x144xf32>, vector<48x144xf32> -> vector<48x144xf32>
    %13 = arith.addf %7, %12 : vector<48x144xf32>
    %14 = vector.extract_strided_slice %2 {offsets = [0, 2, 0], sizes = [2, 24, 28], strides = [1, 1, 1]} : vector<2x28x28xf32> to vector<2x24x28xf32>
    %15 = vector.shape_cast %14 : vector<2x24x28xf32> to vector<48x28xf32>
    %c2 = arith.constant 2 : index
    %c0_9 = arith.constant 0 : index
    %c0_10 = arith.constant 0 : index
    %16 = vector.load %arg1[%c2, %c0_9, %c0_10] : memref<5x28x144xf32, #tpu.memory_space<vmem>>, vector<1x28x144xf32>
    %17 = vector.shape_cast %16 : vector<1x28x144xf32> to vector<28x144xf32>
    %cst_11 = arith.constant dense<0.000000e+00> : vector<48x144xf32>
    %18 = tpu.matmul %15, %17, %cst_11 {dimension_numbers = #tpu.dot_dimension_numbers<[1], [0], [0], [1], [0, 0, 1, 1], [], []>} : vector<48x28xf32>, vector<28x144xf32>, vector<48x144xf32> -> vector<48x144xf32>
    %19 = arith.addf %13, %18 : vector<48x144xf32>
    %20 = vector.extract_strided_slice %2 {offsets = [0, 3, 0], sizes = [2, 24, 28], strides = [1, 1, 1]} : vector<2x28x28xf32> to vector<2x24x28xf32>
    %21 = vector.shape_cast %20 : vector<2x24x28xf32> to vector<48x28xf32>
    %c3 = arith.constant 3 : index
    %c0_12 = arith.constant 0 : index
    %c0_13 = arith.constant 0 : index
    %22 = vector.load %arg1[%c3, %c0_12, %c0_13] : memref<5x28x144xf32, #tpu.memory_space<vmem>>, vector<1x28x144xf32>
    %23 = vector.shape_cast %22 : vector<1x28x144xf32> to vector<28x144xf32>
    %cst_14 = arith.constant dense<0.000000e+00> : vector<48x144xf32>
    %24 = tpu.matmul %21, %23, %cst_14 {dimension_numbers = #tpu.dot_dimension_numbers<[1], [0], [0], [1], [0, 0, 1, 1], [], []>} : vector<48x28xf32>, vector<28x144xf32>, vector<48x144xf32> -> vector<48x144xf32>
    %25 = arith.addf %19, %24 : vector<48x144xf32>
    %26 = vector.extract_strided_slice %2 {offsets = [0, 4, 0], sizes = [2, 24, 28], strides = [1, 1, 1]} : vector<2x28x28xf32> to vector<2x24x28xf32>
    %27 = vector.shape_cast %26 : vector<2x24x28xf32> to vector<48x28xf32>
    %c4 = arith.constant 4 : index
    %c0_15 = arith.constant 0 : index
    %c0_16 = arith.constant 0 : index
    %28 = vector.load %arg1[%c4, %c0_15, %c0_16] : memref<5x28x144xf32, #tpu.memory_space<vmem>>, vector<1x28x144xf32>
    %29 = vector.shape_cast %28 : vector<1x28x144xf32> to vector<28x144xf32>
    %cst_17 = arith.constant dense<0.000000e+00> : vector<48x144xf32>
    %30 = tpu.matmul %27, %29, %cst_17 {dimension_numbers = #tpu.dot_dimension_numbers<[1], [0], [0], [1], [0, 0, 1, 1], [], []>} : vector<48x28xf32>, vector<28x144xf32>, vector<48x144xf32> -> vector<48x144xf32>
    %31 = arith.addf %25, %30 : vector<48x144xf32>
    %c0_18 = arith.constant 0 : index
    %c0_19 = arith.constant 0 : index
    %32 = vector.load %arg2[%c0_18, %c0_19] : memref<1x144xf32, #tpu.memory_space<vmem>>, vector<1x144xf32>
    %33 = vector.broadcast %32 : vector<1x144xf32> to vector<48x144xf32>
    %34 = arith.addf %31, %33 : vector<48x144xf32>
    %cst_20 = arith.constant 0.000000e+00 : f32
    %35 = vector.broadcast %cst_20 : f32 to vector<48x144xf32>
    %36 = arith.maximumf %34, %35 : vector<48x144xf32>
    %c0_21 = arith.constant 0 : index
    %c0_22 = arith.constant 0 : index
    %37 = vector.load %arg3[%c0_21, %c0_22] : memref<144x72xf32, #tpu.memory_space<vmem>>, vector<144x72xf32>
    %cst_23 = arith.constant dense<0.000000e+00> : vector<48x72xf32>
    %38 = tpu.matmul %36, %37, %cst_23 {dimension_numbers = #tpu.dot_dimension_numbers<[1], [0], [0], [1], [0, 0, 1, 1], [], []>} : vector<48x144xf32>, vector<144x72xf32>, vector<48x72xf32> -> vector<48x72xf32>
    %c0_24 = arith.constant 0 : index
    %c0_25 = arith.constant 0 : index
    %39 = vector.load %arg4[%c0_24, %c0_25] : memref<144x72xf32, #tpu.memory_space<vmem>>, vector<144x72xf32>
    %cst_26 = arith.constant dense<0.000000e+00> : vector<48x72xf32>
    %40 = tpu.matmul %36, %39, %cst_26 {dimension_numbers = #tpu.dot_dimension_numbers<[1], [0], [0], [1], [0, 0, 1, 1], [], []>} : vector<48x144xf32>, vector<144x72xf32>, vector<48x72xf32> -> vector<48x72xf32>
    %41 = arith.maximumf %38, %40 : vector<48x72xf32>
    %42 = vector.shape_cast %41 : vector<48x72xf32> to vector<24x2x72xf32>
    %43 = vector.extract_strided_slice %42 {offsets = [0, 0, 0], sizes = [24, 1, 72], strides = [1, 1, 1]} : vector<24x2x72xf32> to vector<24x1x72xf32>
    %44 = vector.shape_cast %43 : vector<24x1x72xf32> to vector<24x72xf32>
    %45 = vector.extract_strided_slice %42 {offsets = [0, 1, 0], sizes = [24, 1, 72], strides = [1, 1, 1]} : vector<24x2x72xf32> to vector<24x1x72xf32>
    %46 = vector.shape_cast %45 : vector<24x1x72xf32> to vector<24x72xf32>
    %47 = arith.maximumf %44, %46 : vector<24x72xf32>
    %48 = vector.shape_cast %47 : vector<24x72xf32> to vector<2x12x72xf32>
    %49 = vector.extract_strided_slice %48 {offsets = [0, 0, 0], sizes = [2, 8, 72], strides = [1, 1, 1]} : vector<2x12x72xf32> to vector<2x8x72xf32>
    %50 = vector.shape_cast %49 : vector<2x8x72xf32> to vector<16x72xf32>
    %c0_27 = arith.constant 0 : index
    %c0_28 = arith.constant 0 : index
    %c0_29 = arith.constant 0 : index
    %51 = vector.load %arg5[%c0_27, %c0_28, %c0_29] : memref<5x72x128xf32, #tpu.memory_space<vmem>>, vector<1x72x128xf32>
    %52 = vector.shape_cast %51 : vector<1x72x128xf32> to vector<72x128xf32>
    %cst_30 = arith.constant dense<0.000000e+00> : vector<16x128xf32>
    %53 = tpu.matmul %50, %52, %cst_30 {dimension_numbers = #tpu.dot_dimension_numbers<[1], [0], [0], [1], [0, 0, 1, 1], [], []>} : vector<16x72xf32>, vector<72x128xf32>, vector<16x128xf32> -> vector<16x128xf32>
    %54 = vector.extract_strided_slice %48 {offsets = [0, 1, 0], sizes = [2, 8, 72], strides = [1, 1, 1]} : vector<2x12x72xf32> to vector<2x8x72xf32>
    %55 = vector.shape_cast %54 : vector<2x8x72xf32> to vector<16x72xf32>
    %c1_31 = arith.constant 1 : index
    %c0_32 = arith.constant 0 : index
    %c0_33 = arith.constant 0 : index
    %56 = vector.load %arg5[%c1_31, %c0_32, %c0_33] : memref<5x72x128xf32, #tpu.memory_space<vmem>>, vector<1x72x128xf32>
    %57 = vector.shape_cast %56 : vector<1x72x128xf32> to vector<72x128xf32>
    %cst_34 = arith.constant dense<0.000000e+00> : vector<16x128xf32>
    %58 = tpu.matmul %55, %57, %cst_34 {dimension_numbers = #tpu.dot_dimension_numbers<[1], [0], [0], [1], [0, 0, 1, 1], [], []>} : vector<16x72xf32>, vector<72x128xf32>, vector<16x128xf32> -> vector<16x128xf32>
    %59 = arith.addf %53, %58 : vector<16x128xf32>
    %60 = vector.extract_strided_slice %48 {offsets = [0, 2, 0], sizes = [2, 8, 72], strides = [1, 1, 1]} : vector<2x12x72xf32> to vector<2x8x72xf32>
    %61 = vector.shape_cast %60 : vector<2x8x72xf32> to vector<16x72xf32>
    %c2_35 = arith.constant 2 : index
    %c0_36 = arith.constant 0 : index
    %c0_37 = arith.constant 0 : index
    %62 = vector.load %arg5[%c2_35, %c0_36, %c0_37] : memref<5x72x128xf32, #tpu.memory_space<vmem>>, vector<1x72x128xf32>
    %63 = vector.shape_cast %62 : vector<1x72x128xf32> to vector<72x128xf32>
    %cst_38 = arith.constant dense<0.000000e+00> : vector<16x128xf32>
    %64 = tpu.matmul %61, %63, %cst_38 {dimension_numbers = #tpu.dot_dimension_numbers<[1], [0], [0], [1], [0, 0, 1, 1], [], []>} : vector<16x72xf32>, vector<72x128xf32>, vector<16x128xf32> -> vector<16x128xf32>
    %65 = arith.addf %59, %64 : vector<16x128xf32>
    %66 = vector.extract_strided_slice %48 {offsets = [0, 3, 0], sizes = [2, 8, 72], strides = [1, 1, 1]} : vector<2x12x72xf32> to vector<2x8x72xf32>
    %67 = vector.shape_cast %66 : vector<2x8x72xf32> to vector<16x72xf32>
    %c3_39 = arith.constant 3 : index
    %c0_40 = arith.constant 0 : index
    %c0_41 = arith.constant 0 : index
    %68 = vector.load %arg5[%c3_39, %c0_40, %c0_41] : memref<5x72x128xf32, #tpu.memory_space<vmem>>, vector<1x72x128xf32>
    %69 = vector.shape_cast %68 : vector<1x72x128xf32> to vector<72x128xf32>
    %cst_42 = arith.constant dense<0.000000e+00> : vector<16x128xf32>
    %70 = tpu.matmul %67, %69, %cst_42 {dimension_numbers = #tpu.dot_dimension_numbers<[1], [0], [0], [1], [0, 0, 1, 1], [], []>} : vector<16x72xf32>, vector<72x128xf32>, vector<16x128xf32> -> vector<16x128xf32>
    %71 = arith.addf %65, %70 : vector<16x128xf32>
    %72 = vector.extract_strided_slice %48 {offsets = [0, 4, 0], sizes = [2, 8, 72], strides = [1, 1, 1]} : vector<2x12x72xf32> to vector<2x8x72xf32>
    %73 = vector.shape_cast %72 : vector<2x8x72xf32> to vector<16x72xf32>
    %c4_43 = arith.constant 4 : index
    %c0_44 = arith.constant 0 : index
    %c0_45 = arith.constant 0 : index
    %74 = vector.load %arg5[%c4_43, %c0_44, %c0_45] : memref<5x72x128xf32, #tpu.memory_space<vmem>>, vector<1x72x128xf32>
    %75 = vector.shape_cast %74 : vector<1x72x128xf32> to vector<72x128xf32>
    %cst_46 = arith.constant dense<0.000000e+00> : vector<16x128xf32>
    %76 = tpu.matmul %73, %75, %cst_46 {dimension_numbers = #tpu.dot_dimension_numbers<[1], [0], [0], [1], [0, 0, 1, 1], [], []>} : vector<16x72xf32>, vector<72x128xf32>, vector<16x128xf32> -> vector<16x128xf32>
    %77 = arith.addf %71, %76 : vector<16x128xf32>
    %c0_47 = arith.constant 0 : index
    %c0_48 = arith.constant 0 : index
    %78 = vector.load %arg6[%c0_47, %c0_48] : memref<1x128xf32, #tpu.memory_space<vmem>>, vector<1x128xf32>
    %79 = vector.broadcast %78 : vector<1x128xf32> to vector<16x128xf32>
    %80 = arith.addf %77, %79 : vector<16x128xf32>
    %cst_49 = arith.constant 0.000000e+00 : f32
    %81 = vector.broadcast %cst_49 : f32 to vector<16x128xf32>
    %82 = arith.maximumf %80, %81 : vector<16x128xf32>
    %c0_50 = arith.constant 0 : index
    %c0_51 = arith.constant 0 : index
    %83 = vector.load %arg7[%c0_50, %c0_51] : memref<128x64xf32, #tpu.memory_space<vmem>>, vector<128x64xf32>
    %cst_52 = arith.constant dense<0.000000e+00> : vector<16x64xf32>
    %84 = tpu.matmul %82, %83, %cst_52 {dimension_numbers = #tpu.dot_dimension_numbers<[1], [0], [0], [1], [0, 0, 1, 1], [], []>} : vector<16x128xf32>, vector<128x64xf32>, vector<16x64xf32> -> vector<16x64xf32>
    %c0_53 = arith.constant 0 : index
    %c0_54 = arith.constant 0 : index
    %85 = vector.load %arg8[%c0_53, %c0_54] : memref<128x64xf32, #tpu.memory_space<vmem>>, vector<128x64xf32>
    %cst_55 = arith.constant dense<0.000000e+00> : vector<16x64xf32>
    %86 = tpu.matmul %82, %85, %cst_55 {dimension_numbers = #tpu.dot_dimension_numbers<[1], [0], [0], [1], [0, 0, 1, 1], [], []>} : vector<16x128xf32>, vector<128x64xf32>, vector<16x64xf32> -> vector<16x64xf32>
    %87 = arith.maximumf %84, %86 : vector<16x64xf32>
    %88 = vector.shape_cast %87 : vector<16x64xf32> to vector<8x2x64xf32>
    %89 = vector.extract_strided_slice %88 {offsets = [0, 0, 0], sizes = [8, 1, 64], strides = [1, 1, 1]} : vector<8x2x64xf32> to vector<8x1x64xf32>
    %90 = vector.shape_cast %89 : vector<8x1x64xf32> to vector<8x64xf32>
    %91 = vector.extract_strided_slice %88 {offsets = [0, 1, 0], sizes = [8, 1, 64], strides = [1, 1, 1]} : vector<8x2x64xf32> to vector<8x1x64xf32>
    %92 = vector.shape_cast %91 : vector<8x1x64xf32> to vector<8x64xf32>
    %93 = arith.maximumf %90, %92 : vector<8x64xf32>
    %94 = vector.shape_cast %93 : vector<8x64xf32> to vector<2x4x64xf32>
    %95 = vector.extract_strided_slice %94 {offsets = [0, 0, 0], sizes = [2, 1, 64], strides = [1, 1, 1]} : vector<2x4x64xf32> to vector<2x1x64xf32>
    %96 = vector.shape_cast %95 : vector<2x1x64xf32> to vector<2x64xf32>
    %c0_56 = arith.constant 0 : index
    %c0_57 = arith.constant 0 : index
    %97 = vector.load %arg9[%c0_56, %c0_57] : memref<256x120xf32, #tpu.memory_space<vmem>>, vector<64x120xf32>
    %cst_58 = arith.constant dense<0.000000e+00> : vector<2x120xf32>
    %98 = tpu.matmul %96, %97, %cst_58 {dimension_numbers = #tpu.dot_dimension_numbers<[1], [0], [0], [1], [0, 0, 1, 1], [], []>} : vector<2x64xf32>, vector<64x120xf32>, vector<2x120xf32> -> vector<2x120xf32>
    %99 = vector.extract_strided_slice %94 {offsets = [0, 1, 0], sizes = [2, 1, 64], strides = [1, 1, 1]} : vector<2x4x64xf32> to vector<2x1x64xf32>
    %100 = vector.shape_cast %99 : vector<2x1x64xf32> to vector<2x64xf32>
    %c64 = arith.constant 64 : index
    %c0_59 = arith.constant 0 : index
    %101 = vector.load %arg9[%c64, %c0_59] : memref<256x120xf32, #tpu.memory_space<vmem>>, vector<64x120xf32>
    %cst_60 = arith.constant dense<0.000000e+00> : vector<2x120xf32>
    %102 = tpu.matmul %100, %101, %cst_60 {dimension_numbers = #tpu.dot_dimension_numbers<[1], [0], [0], [1], [0, 0, 1, 1], [], []>} : vector<2x64xf32>, vector<64x120xf32>, vector<2x120xf32> -> vector<2x120xf32>
    %103 = arith.addf %98, %102 : vector<2x120xf32>
    %104 = vector.extract_strided_slice %94 {offsets = [0, 2, 0], sizes = [2, 1, 64], strides = [1, 1, 1]} : vector<2x4x64xf32> to vector<2x1x64xf32>
    %105 = vector.shape_cast %104 : vector<2x1x64xf32> to vector<2x64xf32>
    %c128 = arith.constant 128 : index
    %c0_61 = arith.constant 0 : index
    %106 = vector.load %arg9[%c128, %c0_61] : memref<256x120xf32, #tpu.memory_space<vmem>>, vector<64x120xf32>
    %cst_62 = arith.constant dense<0.000000e+00> : vector<2x120xf32>
    %107 = tpu.matmul %105, %106, %cst_62 {dimension_numbers = #tpu.dot_dimension_numbers<[1], [0], [0], [1], [0, 0, 1, 1], [], []>} : vector<2x64xf32>, vector<64x120xf32>, vector<2x120xf32> -> vector<2x120xf32>
    %108 = arith.addf %103, %107 : vector<2x120xf32>
    %109 = vector.extract_strided_slice %94 {offsets = [0, 3, 0], sizes = [2, 1, 64], strides = [1, 1, 1]} : vector<2x4x64xf32> to vector<2x1x64xf32>
    %110 = vector.shape_cast %109 : vector<2x1x64xf32> to vector<2x64xf32>
    %c192 = arith.constant 192 : index
    %c0_63 = arith.constant 0 : index
    %111 = vector.load %arg9[%c192, %c0_63] : memref<256x120xf32, #tpu.memory_space<vmem>>, vector<64x120xf32>
    %cst_64 = arith.constant dense<0.000000e+00> : vector<2x120xf32>
    %112 = tpu.matmul %110, %111, %cst_64 {dimension_numbers = #tpu.dot_dimension_numbers<[1], [0], [0], [1], [0, 0, 1, 1], [], []>} : vector<2x64xf32>, vector<64x120xf32>, vector<2x120xf32> -> vector<2x120xf32>
    %113 = arith.addf %108, %112 : vector<2x120xf32>
    %c0_65 = arith.constant 0 : index
    %c0_66 = arith.constant 0 : index
    %114 = vector.load %arg10[%c0_65, %c0_66] : memref<1x120xf32, #tpu.memory_space<vmem>>, vector<1x120xf32>
    %115 = vector.broadcast %114 : vector<1x120xf32> to vector<2x120xf32>
    %116 = arith.addf %113, %115 : vector<2x120xf32>
    %cst_67 = arith.constant 0.000000e+00 : f32
    %117 = vector.broadcast %cst_67 : f32 to vector<2x120xf32>
    %118 = arith.maximumf %116, %117 : vector<2x120xf32>
    %c0_68 = arith.constant 0 : index
    %c0_69 = arith.constant 0 : index
    %119 = vector.load %arg11[%c0_68, %c0_69] : memref<120x84xf32, #tpu.memory_space<vmem>>, vector<120x84xf32>
    %cst_70 = arith.constant dense<0.000000e+00> : vector<2x84xf32>
    %120 = tpu.matmul %118, %119, %cst_70 {dimension_numbers = #tpu.dot_dimension_numbers<[1], [0], [0], [1], [0, 0, 1, 1], [], []>} : vector<2x120xf32>, vector<120x84xf32>, vector<2x84xf32> -> vector<2x84xf32>
    %c0_71 = arith.constant 0 : index
    %c0_72 = arith.constant 0 : index
    %121 = vector.load %arg12[%c0_71, %c0_72] : memref<1x84xf32, #tpu.memory_space<vmem>>, vector<1x84xf32>
    %122 = vector.broadcast %121 : vector<1x84xf32> to vector<2x84xf32>
    %123 = arith.addf %120, %122 : vector<2x84xf32>
    %cst_73 = arith.constant 0.000000e+00 : f32
    %124 = vector.broadcast %cst_73 : f32 to vector<2x84xf32>
    %125 = arith.maximumf %123, %124 : vector<2x84xf32>
    %c0_74 = arith.constant 0 : index
    %c0_75 = arith.constant 0 : index
    %126 = vector.load %arg13[%c0_74, %c0_75] : memref<84x10xf32, #tpu.memory_space<vmem>>, vector<84x10xf32>
    %cst_76 = arith.constant dense<0.000000e+00> : vector<2x10xf32>
    %127 = tpu.matmul %125, %126, %cst_76 {dimension_numbers = #tpu.dot_dimension_numbers<[1], [0], [0], [1], [0, 0, 1, 1], [], []>} : vector<2x84xf32>, vector<84x10xf32>, vector<2x10xf32> -> vector<2x10xf32>
    %c0_77 = arith.constant 0 : index
    %c0_78 = arith.constant 0 : index
    %128 = vector.load %arg14[%c0_77, %c0_78] : memref<1x10xf32, #tpu.memory_space<vmem>>, vector<1x10xf32>
    %129 = vector.broadcast %128 : vector<1x10xf32> to vector<2x10xf32>
    %130 = arith.addf %127, %129 : vector<2x10xf32>
    %c0_79 = arith.constant 0 : index
    %c0_80 = arith.constant 0 : index
    %131 = vector.load %arg15[%c0_79, %c0_80] : memref<2x10xf32, #tpu.memory_space<vmem>>, vector<2x10xf32>
    tpu.vector_store %arg15[%c0_79, %c0_80], %130 {strides = array<i32>} : memref<2x10xf32, #tpu.memory_space<vmem>>, vector<2x10xf32>,
    return
  }
}

</mosaic_0001>

<llo_original>
// kernel: cnn_forward.1
$region0: #{cnn_forward.1}
  #allocation0 [shape = 'u32[]', space=smem, size = 0x4, offset = 0x4, fixed_abs, tag = 'smem constant byte address 0x4 - core index']
  #allocation1 [shape = 'u32[72,128]{1,0:T(1,128)}', space=vmem, size = 0x9000, scoped, tag = 'internal scratch']
  %s0 = inlined_call_operand.vmem [shape: f32[2,28,28], index: 0, kind: input, shape index: {}]
  %s1 = inlined_call_operand.hbm [shape: f32[5,28,144], index: 1, kind: input, shape index: {}]
  %s2 = inlined_call_operand.vmem [shape: f32[1,144], index: 2, kind: input, shape index: {}]
  %s3 = inlined_call_operand.vmem [shape: f32[144,72], index: 3, kind: input, shape index: {}]
  %s4 = inlined_call_operand.vmem [shape: f32[144,72], index: 4, kind: input, shape index: {}]
  %s5 = inlined_call_operand.vmem [shape: f32[5,72,128], index: 5, kind: input, shape index: {}]
  %s6 = inlined_call_operand.vmem [shape: f32[1,128], index: 6, kind: input, shape index: {}]
  %s7 = inlined_call_operand.vmem [shape: f32[128,64], index: 7, kind: input, shape index: {}]
  %s8 = inlined_call_operand.vmem [shape: f32[128,64], index: 8, kind: input, shape index: {}]
  %s9 = inlined_call_operand.vmem [shape: f32[256,120], index: 9, kind: input, shape index: {}]
  %s10 = inlined_call_operand.vmem [shape: f32[1,120], index: 10, kind: input, shape index: {}]
  %s11 = inlined_call_operand.vmem [shape: f32[120,84], index: 11, kind: input, shape index: {}]
  %s12 = inlined_call_operand.vmem [shape: f32[1,84], index: 12, kind: input, shape index: {}]
  %s13 = inlined_call_operand.vmem [shape: f32[84,10], index: 13, kind: input, shape index: {}]
  %s14 = inlined_call_operand.vmem [shape: f32[1,10], index: 14, kind: input, shape index: {}]
  %s15 = inlined_call_operand.hbm [shape: f32[2,10], index: 15, kind: output, shape index: {}]
  %s16 = sld [smem:[#allocation0]]
  $region74: #{cnn_forward.1} parent=0
    _
  %s18 = ssub.s32 1, %s16
  %s19 = scalar_select 0, %s18, %s16
  $region1: #{cnn_forward.1} parent=0
    #allocation2 [shape = 'u8[163840]{0}', space=vmem, size = 0x28000, scoped, tag = 'input window, operand 1, single buffered']
    #allocation3 [shape = 's32[1]{0}', space=sflag, size = 0x4, scoped, tag = 'scoped memory for cnn_forward.1']
    #allocation4 [shape = 's32[1]{0}', space=sflag, size = 0x4, scoped, tag = 'scoped memory for cnn_forward.1']
    #allocation5 [shape = 'u8[1024]{0}', space=vmem, size = 0x400, scoped, tag = 'output window, operand 0, single buffered']
    %20 = vsyncpa [#allocation3], 0
    %21 = vsyncpa [#allocation4], 0
    // Predicated region
    $region2: #{cnn_forward.1} parent=1 // pred_check
      _
    $region3: #{cnn_forward.1} parent=1 // pred_check_branch
      %23 = sbr.rel (0) target = $region5
    $region4: #{cnn_forward.1} parent=1 // pred_region
      _
    $region5: #{cnn_forward.1} parent=1 // pred_fallthru
      _
    // Predicated region
    $region6: #{cnn_forward.1} parent=1 // pred_check
      _
    $region7: #{cnn_forward.1} parent=1 // pred_check_branch
      %25 = sbr.rel (0) target = $region9
    $region8: #{cnn_forward.1} parent=1 // pred_region
      %27 = vsyncadd [#allocation3], 0
      %s28 = sshll.u32 %s1, 4
      %s29 = int_to_ptr.hbm [resolvable:$true] %s28
      %s30 = sshll.u32 [#allocation2], 4
      %s31 = int_to_ptr.vmem [resolvable:$true] %s30
      %36 = dma.hbm_to_vmem [thread:$0]  %s29, 5120, %s31, [#allocation3], 256, 256, 16
    $region9: #{cnn_forward.1} parent=1 // pred_fallthru
      _
    // Predicated region
    $region10: #{cnn_forward.1} parent=1 // pred_check
      _
    $region11: #{cnn_forward.1} parent=1 // pred_check_branch
      %38 = sbr.rel (0) target = $region13
    $region12: #{cnn_forward.1} parent=1 // pred_region
      _
    $region13: #{cnn_forward.1} parent=1 // pred_fallthru
      _
    // Predicated region
    $region14: #{cnn_forward.1} parent=1 // pred_check
      _
    $region15: #{cnn_forward.1} parent=1 // pred_check_branch
      %40 = sbr.rel (0) target = $region17
    $region16: #{cnn_forward.1} parent=1 // pred_region
      _
    $region17: #{cnn_forward.1} parent=1 // pred_fallthru
      _
    // Predicated region
    $region18: #{cnn_forward.1} parent=1 // pred_check
      _
    $region19: #{cnn_forward.1} parent=1 // pred_check_branch
      %42 = sbr.rel (0) target = $region21
    $region20: #{cnn_forward.1} parent=1 // pred_region
      _
    $region21: #{cnn_forward.1} parent=1 // pred_fallthru
      _
    // Predicated region
    $region22: #{cnn_forward.1} parent=1 // pred_check
      _
    $region23: #{cnn_forward.1} parent=1 // pred_check_branch
      %44 = sbr.rel (0) target = $region25
    $region24: #{cnn_forward.1} parent=1 // pred_region
      _
    $region25: #{cnn_forward.1} parent=1 // pred_fallthru
      _
    // Predicated region
    $region26: #{cnn_forward.1} parent=1 // pred_check
      _
    $region27: #{cnn_forward.1} parent=1 // pred_check_branch
      %46 = sbr.rel (0) target = $region29
    $region28: #{cnn_forward.1} parent=1 // pred_region
      _
    $region29: #{cnn_forward.1} parent=1 // pred_fallthru
      _
    // Predicated region
    $region30: #{cnn_forward.1} parent=1 // pred_check
      _
    $region31: #{cnn_forward.1} parent=1 // pred_check_branch
      %48 = sbr.rel (0) target = $region33
    $region32: #{cnn_forward.1} parent=1 // pred_region
      _
    $region33: #{cnn_forward.1} parent=1 // pred_fallthru
      _
    // Predicated region
    $region34: #{cnn_forward.1} parent=1 // pred_check
      _
    $region35: #{cnn_forward.1} parent=1 // pred_check_branch
      %50 = sbr.rel (0) target = $region37
    $region36: #{cnn_forward.1} parent=1 // pred_region
      _
    $region37: #{cnn_forward.1} parent=1 // pred_fallthru
      _
    // Predicated region
    $region38: #{cnn_forward.1} parent=1 // pred_check
      _
    $region39: #{cnn_forward.1} parent=1 // pred_check_branch
      %52 = sbr.rel (0) target = $region41
    $region40: #{cnn_forward.1} parent=1 // pred_region
      _
    $region41: #{cnn_forward.1} parent=1 // pred_fallthru
      _
    // Predicated region
    $region42: #{cnn_forward.1} parent=1 // pred_check
      _
    $region43: #{cnn_forward.1} parent=1 // pred_check_branch
      %54 = sbr.rel (0) target = $region45
    $region44: #{cnn_forward.1} parent=1 // pred_region
      _
    $region45: #{cnn_forward.1} parent=1 // pred_fallthru
      _
    // Predicated region
    $region46: #{cnn_forward.1} parent=1 // pred_check
      _
    $region47: #{cnn_forward.1} parent=1 // pred_check_branch
      %56 = sbr.rel (0) target = $region49
    $region48: #{cnn_forward.1} parent=1 // pred_region
      _
    $region49: #{cnn_forward.1} parent=1 // pred_fallthru
      _
    // Predicated region
    $region50: #{cnn_forward.1} parent=1 // pred_check
      _
    $region51: #{cnn_forward.1} parent=1 // pred_check_branch
      %58 = sbr.rel (0) target = $region53
    $region52: #{cnn_forward.1} parent=1 // pred_region
      _
    $region53: #{cnn_forward.1} parent=1 // pred_fallthru
      _
    // Predicated region
    $region54: #{cnn_forward.1} parent=1 // pred_check
      _
    $region55: #{cnn_forward.1} parent=1 // pred_check_branch
      %60 = sbr.rel (0) target = $region57
    $region56: #{cnn_forward.1} parent=1 // pred_region
      _
    $region57: #{cnn_forward.1} parent=1 // pred_fallthru
      _
    // Predicated region
    $region58: #{cnn_forward.1} parent=1 // pred_check
      _
    $region59: #{cnn_forward.1} parent=1 // pred_check_branch
      %62 = sbr.rel (0) target = $region61
    $region60: #{cnn_forward.1} parent=1 // pred_region
      _
    $region61: #{cnn_forward.1} parent=1 // pred_fallthru
      _
    // Predicated region
    $region62: #{cnn_forward.1} parent=1 // pred_check
      _
    $region63: #{cnn_forward.1} parent=1 // pred_check_branch
      %64 = sbr.rel (0) target = $region65
    $region64: #{cnn_forward.1} parent=1 // pred_region
      %66 = dma.done [#allocation3], 5120
    $region65: #{cnn_forward.1} parent=1 // pred_fallthru
      _
    %v67 = vld [vmem:[%s0] sm:$0xff]
    %v68 = vld [vmem:[%s0 + $0x8] sm:$0xff]
    %v69 = vld [vmem:[%s0 + $0x10] sm:$0xff]
    %v70 = vld [vmem:[%s0 + $0x18] sm:$0xf]
    %v71 = vld [vmem:[%s0 + $0x20] sm:$0xff]
    %v72 = vld [vmem:[%s0 + $0x28] sm:$0xff]
    %v73 = vld [vmem:[%s0 + $0x30] sm:$0xff]
    %v74 = vld [vmem:[%s0 + $0x38] sm:$0xf]
    %v75 = vmax.f32 %v67, 0.0
    %v76 = vmax.f32 %v68, 0.0
    %v77 = vmax.f32 %v69, 0.0
    %v78 = vmax.f32 %v70, 0.0
    %v79 = vmax.f32 %v71, 0.0
    %v80 = vmax.f32 %v72, 0.0
    %v81 = vmax.f32 %v73, 0.0
    %v82 = vmax.f32 %v74, 0.0
    %v83 = vld [vmem:[#allocation2] sm:$0xff]
    %v84 = vld [vmem:[#allocation2 + $0x8] sm:$0xff]
    %v85 = vld [vmem:[#allocation2 + $0x10] sm:$0xff]
    %v86 = vld [vmem:[#allocation2 + $0x18] sm:$0xff]
    %v87 = vld [vmem:[#allocation2 + $0x20] sm:$0xff]
    %v88 = vld [vmem:[#allocation2 + $0x28] sm:$0xff]
    %v89 = vld [vmem:[#allocation2 + $0x30] sm:$0xf]
    %v90 = vld [vmem:[#allocation2 + $0x38] sm:$0xf]
    %vm99 = vcmask 1046528
    %v100 = vrot.slane %v75, 1
    %v101 = vrot.slane %v76, 1
    %v102 = vsel %vm99, %v100, %v101
    %v103 = vrot.slane %v77, 1
    %v104 = vsel %vm99, %v101, %v103
    %v105 = vrot.slane %v78, 1
    %v106 = vsel %vm99, %v103, %v105
    %v107 = vrot.slane %v79, 1
    %v108 = vrot.slane %v80, 1
    %v109 = vsel %vm99, %v107, %v108
    %v110 = vrot.slane %v81, 1
    %v111 = vsel %vm99, %v108, %v110
    %v112 = vrot.slane %v82, 1
    %v113 = vsel %vm99, %v110, %v112
    %s114 = scalar_lea.vmem [#allocation2], 64
    %v115 = vld [vmem:[%s114] sm:$0xff]
    %v116 = vld [vmem:[%s114 + $0x8] sm:$0xff]
    %v117 = vld [vmem:[%s114 + $0x10] sm:$0xff]
    %v118 = vld [vmem:[%s114 + $0x18] sm:$0xff]
    %v119 = vld [vmem:[%s114 + $0x20] sm:$0xff]
    %v120 = vld [vmem:[%s114 + $0x28] sm:$0xff]
    %v121 = vld [vmem:[%s114 + $0x30] sm:$0xf]
    %v122 = vld [vmem:[%s114 + $0x38] sm:$0xf]
    %vm123 = vcmask 228352
    %v124 = vsel %vm123, %v102, 0
    %v126 = vsel %vm123, %v104, 0
    %v128 = vsel %vm123, %v106, 0
    %v130 = vsel %vm123, %v109, 0
    %v132 = vsel %vm123, %v111, 0
    %v134 = vsel %vm123, %v113, 0
    %vm136 = vcmask 1043456
    %v138 = vsel %vm136, %v121, 0
    %v141 = vsel %vm136, %v122, 0
    %143 = vmatpush.msra.mxu0 0.0
    %144 = vmatpush.msra.mxu0 0.0
    %145 = vmatpush.msra.mxu0 0.0
    %146 = vmatpush.msra.mxu0 0.0
    %147 = vmatpush.msra.mxu0 0.0
    %148 = vmatpush.msra.mxu0 0.0
    %149 = vmatpush.msra.mxu0 0.0
    %150 = vmatpush.msra.mxu0 0.0
    %151 = vmatpush.msra.mxu0 0.0
    %152 = vmatpush.msra.mxu0 0.0
    %153 = vmatpush.msra.mxu0 0.0
    %154 = vmatpush.msra.mxu0 0.0
    %155 = vmatpush.msra.mxu0 %v138
    %156 = vmatpush.msra.mxu0 %v119
    %157 = vmatpush.msra.mxu0 %v117
    %158 = vmatpush.msra.mxu0 %v115
    %159 = vmatmul.f32.gmra.mxu0 %v124
    %v160 = vpop.f32.mrf.mxu0
    %v161 = vadd.f32 0.0, %v160
    %162 = vmatmul.f32.gmra.mxu0 %v126
    %v163 = vpop.f32.mrf.mxu0
    %v164 = vadd.f32 0.0, %v163
    %165 = vmatmul.f32.gmra.mxu0 %v128
    %v166 = vpop.f32.mrf.mxu0
    %v167 = vadd.f32 0.0, %v166
    %168 = vmatmul.f32.gmra.mxu0 %v130
    %v169 = vpop.f32.mrf.mxu0
    %v170 = vadd.f32 0.0, %v169
    %171 = vmatmul.f32.gmra.mxu0 %v132
    %v172 = vpop.f32.mrf.mxu0
    %v173 = vadd.f32 0.0, %v172
    %174 = vmatmul.f32.gmra.mxu0 %v134
    %v175 = vpop.f32.mrf.mxu0
    %v176 = vadd.f32 0.0, %v175
    %177 = vdwg.mxu0
    %178 = vmatpush.msra.mxu0 0.0
    %179 = vmatpush.msra.mxu0 0.0
    %180 = vmatpush.msra.mxu0 0.0
    %181 = vmatpush.msra.mxu0 0.0
    %182 = vmatpush.msra.mxu0 0.0
    %183 = vmatpush.msra.mxu0 0.0
    %184 = vmatpush.msra.mxu0 0.0
    %185 = vmatpush.msra.mxu0 0.0
    %186 = vmatpush.msra.mxu0 0.0
    %187 = vmatpush.msra.mxu0 0.0
    %188 = vmatpush.msra.mxu0 0.0
    %189 = vmatpush.msra.mxu0 0.0
    %190 = vmatpush.msra.mxu0 %v141
    %191 = vmatpush.msra.mxu0 %v120
    %192 = vmatpush.msra.mxu0 %v118
    %193 = vmatpush.msra.mxu0 %v116
    %194 = vmatmul.f32.gmra.mxu0 %v124
    %v195 = vpop.f32.mrf.mxu0
    %v196 = vadd.f32 0.0, %v195
    %197 = vmatmul.f32.gmra.mxu0 %v126
    %v198 = vpop.f32.mrf.mxu0
    %v199 = vadd.f32 0.0, %v198
    %200 = vmatmul.f32.gmra.mxu0 %v128
    %v201 = vpop.f32.mrf.mxu0
    %v202 = vadd.f32 0.0, %v201
    %203 = vmatmul.f32.gmra.mxu0 %v130
    %v204 = vpop.f32.mrf.mxu0
    %v205 = vadd.f32 0.0, %v204
    %206 = vmatmul.f32.gmra.mxu0 %v132
    %v207 = vpop.f32.mrf.mxu0
    %v208 = vadd.f32 0.0, %v207
    %209 = vmatmul.f32.gmra.mxu0 %v134
    %v210 = vpop.f32.mrf.mxu0
    %v211 = vadd.f32 0.0, %v210
    %212 = vdwg.mxu0
    %v213 = vsel %vm123, %v75, 0
    %v215 = vsel %vm123, %v76, 0
    %v217 = vsel %vm123, %v77, 0
    %v219 = vsel %vm123, %v79, 0
    %v221 = vsel %vm123, %v80, 0
    %v223 = vsel %vm123, %v81, 0
    %v226 = vsel %vm136, %v89, 0
    %v229 = vsel %vm136, %v90, 0
    %231 = vmatpush.msra.mxu0 0.0
    %232 = vmatpush.msra.mxu0 0.0
    %233 = vmatpush.msra.mxu0 0.0
    %234 = vmatpush.msra.mxu0 0.0
    %235 = vmatpush.msra.mxu0 0.0
    %236 = vmatpush.msra.mxu0 0.0
    %237 = vmatpush.msra.mxu0 0.0
    %238 = vmatpush.msra.mxu0 0.0
    %239 = vmatpush.msra.mxu0 0.0
    %240 = vmatpush.msra.mxu0 0.0
    %241 = vmatpush.msra.mxu0 0.0
    %242 = vmatpush.msra.mxu0 0.0
    %243 = vmatpush.msra.mxu0 %v226
    %244 = vmatpush.msra.mxu0 %v87
    %245 = vmatpush.msra.mxu0 %v85
    %246 = vmatpush.msra.mxu0 %v83
    %247 = vmatmul.f32.gmra.mxu0 %v213
    %v248 = vpop.f32.mrf.mxu0
    %v249 = vadd.f32 %v161, %v248
    %250 = vmatmul.f32.gmra.mxu0 %v215
    %v251 = vpop.f32.mrf.mxu0
    %v252 = vadd.f32 %v164, %v251
    %253 = vmatmul.f32.gmra.mxu0 %v217
    %v254 = vpop.f32.mrf.mxu0
    %v255 = vadd.f32 %v167, %v254
    %256 = vmatmul.f32.gmra.mxu0 %v219
    %v257 = vpop.f32.mrf.mxu0
    %v258 = vadd.f32 %v170, %v257
    %259 = vmatmul.f32.gmra.mxu0 %v221
    %v260 = vpop.f32.mrf.mxu0
    %v261 = vadd.f32 %v173, %v260
    %262 = vmatmul.f32.gmra.mxu0 %v223
    %v263 = vpop.f32.mrf.mxu0
    %v264 = vadd.f32 %v176, %v263
    %265 = vdwg.mxu0
    %266 = vmatpush.msra.mxu0 0.0
    %267 = vmatpush.msra.mxu0 0.0
    %268 = vmatpush.msra.mxu0 0.0
    %269 = vmatpush.msra.mxu0 0.0
    %270 = vmatpush.msra.mxu0 0.0
    %271 = vmatpush.msra.mxu0 0.0
    %272 = vmatpush.msra.mxu0 0.0
    %273 = vmatpush.msra.mxu0 0.0
    %274 = vmatpush.msra.mxu0 0.0
    %275 = vmatpush.msra.mxu0 0.0
    %276 = vmatpush.msra.mxu0 0.0
    %277 = vmatpush.msra.mxu0 0.0
    %278 = vmatpush.msra.mxu0 %v229
    %279 = vmatpush.msra.mxu0 %v88
    %280 = vmatpush.msra.mxu0 %v86
    %281 = vmatpush.msra.mxu0 %v84
    %282 = vmatmul.f32.gmra.mxu0 %v213
    %v283 = vpop.f32.mrf.mxu0
    %v284 = vadd.f32 %v196, %v283
    %285 = vmatmul.f32.gmra.mxu0 %v215
    %v286 = vpop.f32.mrf.mxu0
    %v287 = vadd.f32 %v199, %v286
    %288 = vmatmul.f32.gmra.mxu0 %v217
    %v289 = vpop.f32.mrf.mxu0
    %v290 = vadd.f32 %v202, %v289
    %291 = vmatmul.f32.gmra.mxu0 %v219
    %v292 = vpop.f32.mrf.mxu0
    %v293 = vadd.f32 %v205, %v292
    %294 = vmatmul.f32.gmra.mxu0 %v221
    %v295 = vpop.f32.mrf.mxu0
    %v296 = vadd.f32 %v208, %v295
    %297 = vmatmul.f32.gmra.mxu0 %v223
    %v298 = vpop.f32.mrf.mxu0
    %v299 = vadd.f32 %v211, %v298
    %300 = vdwg.mxu0
    %vm301 = vcmask 1045504
    %v302 = vrot.slane %v75, 2
    %v303 = vrot.slane %v76, 2
    %v304 = vsel %vm301, %v302, %v303
    %v305 = vrot.slane %v77, 2
    %v306 = vsel %vm301, %v303, %v305
    %v307 = vrot.slane %v78, 2
    %v308 = vsel %vm301, %v305, %v307
    %v309 = vrot.slane %v79, 2
    %v310 = vrot.slane %v80, 2
    %v311 = vsel %vm301, %v309, %v310
    %v312 = vrot.slane %v81, 2
    %v313 = vsel %vm301, %v310, %v312
    %v314 = vrot.slane %v82, 2
    %v315 = vsel %vm301, %v312, %v314
    %s316 = scalar_lea.vmem [#allocation2], 128
    %v317 = vld [vmem:[%s316] sm:$0xff]
    %v318 = vld [vmem:[%s316 + $0x8] sm:$0xff]
    %v319 = vld [vmem:[%s316 + $0x10] sm:$0xff]
    %v320 = vld [vmem:[%s316 + $0x18] sm:$0xff]
    %v321 = vld [vmem:[%s316 + $0x20] sm:$0xff]
    %v322 = vld [vmem:[%s316 + $0x28] sm:$0xff]
    %v323 = vld [vmem:[%s316 + $0x30] sm:$0xf]
    %v324 = vld [vmem:[%s316 + $0x38] sm:$0xf]
    %v325 = vsel %vm123, %v304, 0
    %v327 = vsel %vm123, %v306, 0
    %v329 = vsel %vm123, %v308, 0
    %v331 = vsel %vm123, %v311, 0
    %v333 = vsel %vm123, %v313, 0
    %v335 = vsel %vm123, %v315, 0
    %v338 = vsel %vm136, %v323, 0
    %v341 = vsel %vm136, %v324, 0
    %343 = vmatpush.msra.mxu0 0.0
    %344 = vmatpush.msra.mxu0 0.0
    %345 = vmatpush.msra.mxu0 0.0
    %346 = vmatpush.msra.mxu0 0.0
    %347 = vmatpush.msra.mxu0 0.0
    %348 = vmatpush.msra.mxu0 0.0
    %349 = vmatpush.msra.mxu0 0.0
    %350 = vmatpush.msra.mxu0 0.0
    %351 = vmatpush.msra.mxu0 0.0
    %352 = vmatpush.msra.mxu0 0.0
    %353 = vmatpush.msra.mxu0 0.0
    %354 = vmatpush.msra.mxu0 0.0
    %355 = vmatpush.msra.mxu0 %v338
    %356 = vmatpush.msra.mxu0 %v321
    %357 = vmatpush.msra.mxu0 %v319
    %358 = vmatpush.msra.mxu0 %v317
    %359 = vmatmul.f32.gmra.mxu0 %v325
    %v360 = vpop.f32.mrf.mxu0
    %v361 = vadd.f32 0.0, %v360
    %362 = vmatmul.f32.gmra.mxu0 %v327
    %v363 = vpop.f32.mrf.mxu0
    %v364 = vadd.f32 0.0, %v363
    %365 = vmatmul.f32.gmra.mxu0 %v329
    %v366 = vpop.f32.mrf.mxu0
    %v367 = vadd.f32 0.0, %v366
    %368 = vmatmul.f32.gmra.mxu0 %v331
    %v369 = vpop.f32.mrf.mxu0
    %v370 = vadd.f32 0.0, %v369
    %371 = vmatmul.f32.gmra.mxu0 %v333
    %v372 = vpop.f32.mrf.mxu0
    %v373 = vadd.f32 0.0, %v372
    %374 = vmatmul.f32.gmra.mxu0 %v335
    %v375 = vpop.f32.mrf.mxu0
    %v376 = vadd.f32 0.0, %v375
    %377 = vdwg.mxu0
    %378 = vmatpush.msra.mxu0 0.0
    %379 = vmatpush.msra.mxu0 0.0
    %380 = vmatpush.msra.mxu0 0.0
    %381 = vmatpush.msra.mxu0 0.0
    %382 = vmatpush.msra.mxu0 0.0
    %383 = vmatpush.msra.mxu0 0.0
    %384 = vmatpush.msra.mxu0 0.0
    %385 = vmatpush.msra.mxu0 0.0
    %386 = vmatpush.msra.mxu0 0.0
    %387 = vmatpush.msra.mxu0 0.0
    %388 = vmatpush.msra.mxu0 0.0
    %389 = vmatpush.msra.mxu0 0.0
    %390 = vmatpush.msra.mxu0 %v341
    %391 = vmatpush.msra.mxu0 %v322
    %392 = vmatpush.msra.mxu0 %v320
    %393 = vmatpush.msra.mxu0 %v318
    %394 = vmatmul.f32.gmra.mxu0 %v325
    %v395 = vpop.f32.mrf.mxu0
    %v396 = vadd.f32 0.0, %v395
    %397 = vmatmul.f32.gmra.mxu0 %v327
    %v398 = vpop.f32.mrf.mxu0
    %v399 = vadd.f32 0.0, %v398
    %400 = vmatmul.f32.gmra.mxu0 %v329
    %v401 = vpop.f32.mrf.mxu0
    %v402 = vadd.f32 0.0, %v401
    %403 = vmatmul.f32.gmra.mxu0 %v331
    %v404 = vpop.f32.mrf.mxu0
    %v405 = vadd.f32 0.0, %v404
    %406 = vmatmul.f32.gmra.mxu0 %v333
    %v407 = vpop.f32.mrf.mxu0
    %v408 = vadd.f32 0.0, %v407
    %409 = vmatmul.f32.gmra.mxu0 %v335
    %v410 = vpop.f32.mrf.mxu0
    %v411 = vadd.f32 0.0, %v410
    %412 = vdwg.mxu0
    %v413 = vadd.f32 %v249, %v361
    %v414 = vadd.f32 %v284, %v396
    %v415 = vadd.f32 %v252, %v364
    %v416 = vadd.f32 %v287, %v399
    %v417 = vadd.f32 %v255, %v367
    %v418 = vadd.f32 %v290, %v402
    %v419 = vadd.f32 %v258, %v370
    %v420 = vadd.f32 %v293, %v405
    %v421 = vadd.f32 %v261, %v373
    %v422 = vadd.f32 %v296, %v408
    %v423 = vadd.f32 %v264, %v376
    %v424 = vadd.f32 %v299, %v411
    %vm425 = vcmask 1044480
    %v426 = vrot.slane %v75, 3
    %v427 = vrot.slane %v76, 3
    %v428 = vsel %vm425, %v426, %v427
    %v429 = vrot.slane %v77, 3
    %v430 = vsel %vm425, %v427, %v429
    %v431 = vrot.slane %v78, 3
    %v432 = vsel %vm425, %v429, %v431
    %v433 = vrot.slane %v79, 3
    %v434 = vrot.slane %v80, 3
    %v435 = vsel %vm425, %v433, %v434
    %v436 = vrot.slane %v81, 3
    %v437 = vsel %vm425, %v434, %v436
    %v438 = vrot.slane %v82, 3
    %v439 = vsel %vm425, %v436, %v438
    %s440 = scalar_lea.vmem [#allocation2], 192
    %v441 = vld [vmem:[%s440] sm:$0xff]
    %v442 = vld [vmem:[%s440 + $0x8] sm:$0xff]
    %v443 = vld [vmem:[%s440 + $0x10] sm:$0xff]
    %v444 = vld [vmem:[%s440 + $0x18] sm:$0xff]
    %v445 = vld [vmem:[%s440 + $0x20] sm:$0xff]
    %v446 = vld [vmem:[%s440 + $0x28] sm:$0xff]
    %v447 = vld [vmem:[%s440 + $0x30] sm:$0xf]
    %v448 = vld [vmem:[%s440 + $0x38] sm:$0xf]
    %v449 = vsel %vm123, %v428, 0
    %v451 = vsel %vm123, %v430, 0
    %v453 = vsel %vm123, %v432, 0
    %v455 = vsel %vm123, %v435, 0
    %v457 = vsel %vm123, %v437, 0
    %v459 = vsel %vm123, %v439, 0
    %v462 = vsel %vm136, %v447, 0
    %v465 = vsel %vm136, %v448, 0
    %467 = vmatpush.msra.mxu0 0.0
    %468 = vmatpush.msra.mxu0 0.0
    %469 = vmatpush.msra.mxu0 0.0
    %470 = vmatpush.msra.mxu0 0.0
    %471 = vmatpush.msra.mxu0 0.0
    %472 = vmatpush.msra.mxu0 0.0
    %473 = vmatpush.msra.mxu0 0.0
    %474 = vmatpush.msra.mxu0 0.0
    %475 = vmatpush.msra.mxu0 0.0
    %476 = vmatpush.msra.mxu0 0.0
    %477 = vmatpush.msra.mxu0 0.0
    %478 = vmatpush.msra.mxu0 0.0
    %479 = vmatpush.msra.mxu0 %v462
    %480 = vmatpush.msra.mxu0 %v445
    %481 = vmatpush.msra.mxu0 %v443
    %482 = vmatpush.msra.mxu0 %v441
    %483 = vmatmul.f32.gmra.mxu0 %v449
    %v484 = vpop.f32.mrf.mxu0
    %v485 = vadd.f32 0.0, %v484
    %486 = vmatmul.f32.gmra.mxu0 %v451
    %v487 = vpop.f32.mrf.mxu0
    %v488 = vadd.f32 0.0, %v487
    %489 = vmatmul.f32.gmra.mxu0 %v453
    %v490 = vpop.f32.mrf.mxu0
    %v491 = vadd.f32 0.0, %v490
    %492 = vmatmul.f32.gmra.mxu0 %v455
    %v493 = vpop.f32.mrf.mxu0
    %v494 = vadd.f32 0.0, %v493
    %495 = vmatmul.f32.gmra.mxu0 %v457
    %v496 = vpop.f32.mrf.mxu0
    %v497 = vadd.f32 0.0, %v496
    %498 = vmatmul.f32.gmra.mxu0 %v459
    %v499 = vpop.f32.mrf.mxu0
    %v500 = vadd.f32 0.0, %v499
    %501 = vdwg.mxu0
    %502 = vmatpush.msra.mxu0 0.0
    %503 = vmatpush.msra.mxu0 0.0
    %504 = vmatpush.msra.mxu0 0.0
    %505 = vmatpush.msra.mxu0 0.0
    %506 = vmatpush.msra.mxu0 0.0
    %507 = vmatpush.msra.mxu0 0.0
    %508 = vmatpush.msra.mxu0 0.0
    %509 = vmatpush.msra.mxu0 0.0
    %510 = vmatpush.msra.mxu0 0.0
    %511 = vmatpush.msra.mxu0 0.0
    %512 = vmatpush.msra.mxu0 0.0
    %513 = vmatpush.msra.mxu0 0.0
    %514 = vmatpush.msra.mxu0 %v465
    %515 = vmatpush.msra.mxu0 %v446
    %516 = vmatpush.msra.mxu0 %v444
    %517 = vmatpush.msra.mxu0 %v442
    %518 = vmatmul.f32.gmra.mxu0 %v449
    %v519 = vpop.f32.mrf.mxu0
    %v520 = vadd.f32 0.0, %v519
    %521 = vmatmul.f32.gmra.mxu0 %v451
    %v522 = vpop.f32.mrf.mxu0
    %v523 = vadd.f32 0.0, %v522
    %524 = vmatmul.f32.gmra.mxu0 %v453
    %v525 = vpop.f32.mrf.mxu0
    %v526 = vadd.f32 0.0, %v525
    %527 = vmatmul.f32.gmra.mxu0 %v455
    %v528 = vpop.f32.mrf.mxu0
    %v529 = vadd.f32 0.0, %v528
    %530 = vmatmul.f32.gmra.mxu0 %v457
    %v531 = vpop.f32.mrf.mxu0
    %v532 = vadd.f32 0.0, %v531
    %533 = vmatmul.f32.gmra.mxu0 %v459
    %v534 = vpop.f32.mrf.mxu0
    %v535 = vadd.f32 0.0, %v534
    %536 = vdwg.mxu0
    %v537 = vadd.f32 %v413, %v485
    %v538 = vadd.f32 %v414, %v520
    %v539 = vadd.f32 %v415, %v488
    %v540 = vadd.f32 %v416, %v523
    %v541 = vadd.f32 %v417, %v491
    %v542 = vadd.f32 %v418, %v526
    %v543 = vadd.f32 %v419, %v494
    %v544 = vadd.f32 %v420, %v529
    %v545 = vadd.f32 %v421, %v497
    %v546 = vadd.f32 %v422, %v532
    %v547 = vadd.f32 %v423, %v500
    %v548 = vadd.f32 %v424, %v535
    %v549 = vrot.slane %v75, 4
    %v550 = vrot.slane %v76, 4
    %v551 = vsel %vm136, %v549, %v550
    %v552 = vrot.slane %v77, 4
    %v553 = vsel %vm136, %v550, %v552
    %v554 = vrot.slane %v78, 4
    %v555 = vsel %vm136, %v552, %v554
    %v556 = vrot.slane %v79, 4
    %v557 = vrot.slane %v80, 4
    %v558 = vsel %vm136, %v556, %v557
    %v559 = vrot.slane %v81, 4
    %v560 = vsel %vm136, %v557, %v559
    %v561 = vrot.slane %v82, 4
    %v562 = vsel %vm136, %v559, %v561
    %s563 = scalar_lea.vmem [#allocation2], 256
    %v564 = vld [vmem:[%s563] sm:$0xff]
    %v565 = vld [vmem:[%s563 + $0x8] sm:$0xff]
    %v566 = vld [vmem:[%s563 + $0x10] sm:$0xff]
    %v567 = vld [vmem:[%s563 + $0x18] sm:$0xff]
    %v568 = vld [vmem:[%s563 + $0x20] sm:$0xff]
    %v569 = vld [vmem:[%s563 + $0x28] sm:$0xff]
    %v570 = vld [vmem:[%s563 + $0x30] sm:$0xf]
    %v571 = vld [vmem:[%s563 + $0x38] sm:$0xf]
    %v572 = vsel %vm123, %v551, 0
    %v574 = vsel %vm123, %v553, 0
    %v576 = vsel %vm123, %v555, 0
    %v578 = vsel %vm123, %v558, 0
    %v580 = vsel %vm123, %v560, 0
    %v582 = vsel %vm123, %v562, 0
    %v585 = vsel %vm136, %v570, 0
    %v588 = vsel %vm136, %v571, 0
    %590 = vmatpush.msra.mxu0 0.0
    %591 = vmatpush.msra.mxu0 0.0
    %592 = vmatpush.msra.mxu0 0.0
    %593 = vmatpush.msra.mxu0 0.0
    %594 = vmatpush.msra.mxu0 0.0
    %595 = vmatpush.msra.mxu0 0.0
    %596 = vmatpush.msra.mxu0 0.0
    %597 = vmatpush.msra.mxu0 0.0
    %598 = vmatpush.msra.mxu0 0.0
    %599 = vmatpush.msra.mxu0 0.0
    %600 = vmatpush.msra.mxu0 0.0
    %601 = vmatpush.msra.mxu0 0.0
    %602 = vmatpush.msra.mxu0 %v585
    %603 = vmatpush.msra.mxu0 %v568
    %604 = vmatpush.msra.mxu0 %v566
    %605 = vmatpush.msra.mxu0 %v564
    %606 = vmatmul.f32.gmra.mxu0 %v572
    %v607 = vpop.f32.mrf.mxu0
    %v608 = vadd.f32 0.0, %v607
    %609 = vmatmul.f32.gmra.mxu0 %v574
    %v610 = vpop.f32.mrf.mxu0
    %v611 = vadd.f32 0.0, %v610
    %612 = vmatmul.f32.gmra.mxu0 %v576
    %v613 = vpop.f32.mrf.mxu0
    %v614 = vadd.f32 0.0, %v613
    %615 = vmatmul.f32.gmra.mxu0 %v578
    %v616 = vpop.f32.mrf.mxu0
    %v617 = vadd.f32 0.0, %v616
    %618 = vmatmul.f32.gmra.mxu0 %v580
    %v619 = vpop.f32.mrf.mxu0
    %v620 = vadd.f32 0.0, %v619
    %621 = vmatmul.f32.gmra.mxu0 %v582
    %v622 = vpop.f32.mrf.mxu0
    %v623 = vadd.f32 0.0, %v622
    %624 = vdwg.mxu0
    %625 = vmatpush.msra.mxu0 0.0
    %626 = vmatpush.msra.mxu0 0.0
    %627 = vmatpush.msra.mxu0 0.0
    %628 = vmatpush.msra.mxu0 0.0
    %629 = vmatpush.msra.mxu0 0.0
    %630 = vmatpush.msra.mxu0 0.0
    %631 = vmatpush.msra.mxu0 0.0
    %632 = vmatpush.msra.mxu0 0.0
    %633 = vmatpush.msra.mxu0 0.0
    %634 = vmatpush.msra.mxu0 0.0
    %635 = vmatpush.msra.mxu0 0.0
    %636 = vmatpush.msra.mxu0 0.0
    %637 = vmatpush.msra.mxu0 %v588
    %638 = vmatpush.msra.mxu0 %v569
    %639 = vmatpush.msra.mxu0 %v567
    %640 = vmatpush.msra.mxu0 %v565
    %641 = vmatmul.f32.gmra.mxu0 %v572
    %v642 = vpop.f32.mrf.mxu0
    %v643 = vadd.f32 0.0, %v642
    %644 = vmatmul.f32.gmra.mxu0 %v574
    %v645 = vpop.f32.mrf.mxu0
    %v646 = vadd.f32 0.0, %v645
    %647 = vmatmul.f32.gmra.mxu0 %v576
    %v648 = vpop.f32.mrf.mxu0
    %v649 = vadd.f32 0.0, %v648
    %650 = vmatmul.f32.gmra.mxu0 %v578
    %v651 = vpop.f32.mrf.mxu0
    %v652 = vadd.f32 0.0, %v651
    %653 = vmatmul.f32.gmra.mxu0 %v580
    %v654 = vpop.f32.mrf.mxu0
    %v655 = vadd.f32 0.0, %v654
    %656 = vmatmul.f32.gmra.mxu0 %v582
    %v657 = vpop.f32.mrf.mxu0
    %v658 = vadd.f32 0.0, %v657
    %659 = vdwg.mxu0
    %v660 = vadd.f32 %v537, %v608
    %v661 = vadd.f32 %v538, %v643
    %v662 = vadd.f32 %v539, %v611
    %v663 = vadd.f32 %v540, %v646
    %v664 = vadd.f32 %v541, %v614
    %v665 = vadd.f32 %v542, %v649
    %v666 = vadd.f32 %v543, %v617
    %v667 = vadd.f32 %v544, %v652
    %v668 = vadd.f32 %v545, %v620
    %v669 = vadd.f32 %v546, %v655
    %v670 = vadd.f32 %v547, %v623
    %v671 = vadd.f32 %v548, %v658
    %v672 = vld [vmem:[%s2] sm:$0x3]
    %v674 = vperm.slane %v672, 0
    %v675 = vperm.slane %v672, 1
    %v678 = vadd.f32 %v660, %v674
    %v679 = vadd.f32 %v661, %v675
    %v680 = vadd.f32 %v662, %v674
    %v681 = vadd.f32 %v663, %v675
    %v682 = vadd.f32 %v664, %v674
    %v683 = vadd.f32 %v665, %v675
    %v684 = vadd.f32 %v666, %v674
    %v685 = vadd.f32 %v667, %v675
    %v686 = vadd.f32 %v668, %v674
    %v687 = vadd.f32 %v669, %v675
    %v688 = vadd.f32 %v670, %v674
    %v689 = vadd.f32 %v671, %v675
    %v690 = vmax.f32 %v678, 0.0
    %v691 = vmax.f32 %v679, 0.0
    %v692 = vmax.f32 %v680, 0.0
    %v693 = vmax.f32 %v681, 0.0
    %v694 = vmax.f32 %v682, 0.0
    %v695 = vmax.f32 %v683, 0.0
    %v696 = vmax.f32 %v684, 0.0
    %v697 = vmax.f32 %v685, 0.0
    %v698 = vmax.f32 %v686, 0.0
    %v699 = vmax.f32 %v687, 0.0
    %v700 = vmax.f32 %v688, 0.0
    %v701 = vmax.f32 %v689, 0.0
    %v702 = vld [vmem:[%s3] sm:$0xff]
    %v703 = vld [vmem:[%s3 + $0x8] sm:$0xff]
    %v704 = vld [vmem:[%s3 + $0x10] sm:$0xff]
    %v705 = vld [vmem:[%s3 + $0x18] sm:$0xff]
    %v706 = vld [vmem:[%s3 + $0x20] sm:$0xff]
    %v707 = vld [vmem:[%s3 + $0x28] sm:$0xff]
    %v708 = vld [vmem:[%s3 + $0x30] sm:$0xff]
    %v709 = vld [vmem:[%s3 + $0x38] sm:$0xff]
    %v710 = vld [vmem:[%s3 + $0x40] sm:$0xff]
    %v711 = vld [vmem:[%s3 + $0x48] sm:$0xff]
    %v712 = vld [vmem:[%s3 + $0x50] sm:$0xff]
    %v713 = vld [vmem:[%s3 + $0x58] sm:$0xff]
    %v714 = vld [vmem:[%s3 + $0x60] sm:$0xff]
    %v715 = vld [vmem:[%s3 + $0x68] sm:$0xff]
    %v716 = vld [vmem:[%s3 + $0x70] sm:$0xff]
    %v717 = vld [vmem:[%s3 + $0x78] sm:$0xff]
    %v718 = vld [vmem:[%s3 + $0x80] sm:$0xff]
    %v719 = vld [vmem:[%s3 + $0x88] sm:$0xff]
    %vm720 = vcmask 130048
    %v722 = vsel %vm720, %v691, 0
    %v725 = vsel %vm720, %v693, 0
    %v728 = vsel %vm720, %v695, 0
    %v731 = vsel %vm720, %v697, 0
    %v734 = vsel %vm720, %v699, 0
    %v737 = vsel %vm720, %v701, 0
    %739 = vmatpush.msra.mxu0 %v717
    %740 = vmatpush.msra.mxu0 %v716
    %741 = vmatpush.msra.mxu0 %v715
    %742 = vmatpush.msra.mxu0 %v714
    %743 = vmatpush.msra.mxu0 %v713
    %744 = vmatpush.msra.mxu0 %v712
    %745 = vmatpush.msra.mxu0 %v711
    %746 = vmatpush.msra.mxu0 %v710
    %747 = vmatpush.msra.mxu0 %v709
    %748 = vmatpush.msra.mxu0 %v708
    %749 = vmatpush.msra.mxu0 %v707
    %750 = vmatpush.msra.mxu0 %v706
    %751 = vmatpush.msra.mxu0 %v705
    %752 = vmatpush.msra.mxu0 %v704
    %753 = vmatpush.msra.mxu0 %v703
    %754 = vmatpush.msra.mxu0 %v702
    %755 = vmatmul.f32.gmra.mxu0 %v690
    %v756 = vpop.f32.mrf.mxu0
    %v757 = vadd.f32 0.0, %v756
    %758 = vmatmul.f32.gmra.mxu0 %v692
    %v759 = vpop.f32.mrf.mxu0
    %v760 = vadd.f32 0.0, %v759
    %761 = vmatmul.f32.gmra.mxu0 %v694
    %v762 = vpop.f32.mrf.mxu0
    %v763 = vadd.f32 0.0, %v762
    %764 = vmatmul.f32.gmra.mxu0 %v696
    %v765 = vpop.f32.mrf.mxu0
    %v766 = vadd.f32 0.0, %v765
    %767 = vmatmul.f32.gmra.mxu0 %v698
    %v768 = vpop.f32.mrf.mxu0
    %v769 = vadd.f32 0.0, %v768
    %770 = vmatmul.f32.gmra.mxu0 %v700
    %v771 = vpop.f32.mrf.mxu0
    %v772 = vadd.f32 0.0, %v771
    %773 = vdwg.mxu0
    %774 = vmatpush.msra.mxu0 0.0
    %775 = vmatpush.msra.mxu0 0.0
    %776 = vmatpush.msra.mxu0 0.0
    %777 = vmatpush.msra.mxu0 0.0
    %778 = vmatpush.msra.mxu0 0.0
    %779 = vmatpush.msra.mxu0 0.0
    %780 = vmatpush.msra.mxu0 0.0
    %781 = vmatpush.msra.mxu0 0.0
    %782 = vmatpush.msra.mxu0 0.0
    %783 = vmatpush.msra.mxu0 0.0
    %784 = vmatpush.msra.mxu0 0.0
    %785 = vmatpush.msra.mxu0 0.0
    %786 = vmatpush.msra.mxu0 0.0
    %787 = vmatpush.msra.mxu0 0.0
    %788 = vmatpush.msra.mxu0 %v719
    %789 = vmatpush.msra.mxu0 %v718
    %790 = vmatmul.f32.gmra.mxu0 %v722
    %v791 = vpop.f32.mrf.mxu0
    %v792 = vadd.f32 %v757, %v791
    %793 = vmatmul.f32.gmra.mxu0 %v725
    %v794 = vpop.f32.mrf.mxu0
    %v795 = vadd.f32 %v760, %v794
    %796 = vmatmul.f32.gmra.mxu0 %v728
    %v797 = vpop.f32.mrf.mxu0
    %v798 = vadd.f32 %v763, %v797
    %799 = vmatmul.f32.gmra.mxu0 %v731
    %v800 = vpop.f32.mrf.mxu0
    %v801 = vadd.f32 %v766, %v800
    %802 = vmatmul.f32.gmra.mxu0 %v734
    %v803 = vpop.f32.mrf.mxu0
    %v804 = vadd.f32 %v769, %v803
    %805 = vmatmul.f32.gmra.mxu0 %v737
    %v806 = vpop.f32.mrf.mxu0
    %v807 = vadd.f32 %v772, %v806
    %808 = vdwg.mxu0
    %v809 = vld [vmem:[%s4] sm:$0xff]
    %v810 = vld [vmem:[%s4 + $0x8] sm:$0xff]
    %v811 = vld [vmem:[%s4 + $0x10] sm:$0xff]
    %v812 = vld [vmem:[%s4 + $0x18] sm:$0xff]
    %v813 = vld [vmem:[%s4 + $0x20] sm:$0xff]
    %v814 = vld [vmem:[%s4 + $0x28] sm:$0xff]
    %v815 = vld [vmem:[%s4 + $0x30] sm:$0xff]
    %v816 = vld [vmem:[%s4 + $0x38] sm:$0xff]
    %v817 = vld [vmem:[%s4 + $0x40] sm:$0xff]
    %v818 = vld [vmem:[%s4 + $0x48] sm:$0xff]
    %v819 = vld [vmem:[%s4 + $0x50] sm:$0xff]
    %v820 = vld [vmem:[%s4 + $0x58] sm:$0xff]
    %v821 = vld [vmem:[%s4 + $0x60] sm:$0xff]
    %v822 = vld [vmem:[%s4 + $0x68] sm:$0xff]
    %v823 = vld [vmem:[%s4 + $0x70] sm:$0xff]
    %v824 = vld [vmem:[%s4 + $0x78] sm:$0xff]
    %v825 = vld [vmem:[%s4 + $0x80] sm:$0xff]
    %v826 = vld [vmem:[%s4 + $0x88] sm:$0xff]
    %827 = vmatpush.msra.mxu0 %v824
    %828 = vmatpush.msra.mxu0 %v823
    %829 = vmatpush.msra.mxu0 %v822
    %830 = vmatpush.msra.mxu0 %v821
    %831 = vmatpush.msra.mxu0 %v820
    %832 = vmatpush.msra.mxu0 %v819
    %833 = vmatpush.msra.mxu0 %v818
    %834 = vmatpush.msra.mxu0 %v817
    %835 = vmatpush.msra.mxu0 %v816
    %836 = vmatpush.msra.mxu0 %v815
    %837 = vmatpush.msra.mxu0 %v814
    %838 = vmatpush.msra.mxu0 %v813
    %839 = vmatpush.msra.mxu0 %v812
    %840 = vmatpush.msra.mxu0 %v811
    %841 = vmatpush.msra.mxu0 %v810
    %842 = vmatpush.msra.mxu0 %v809
    %843 = vmatmul.f32.gmra.mxu0 %v690
    %v844 = vpop.f32.mrf.mxu0
    %v845 = vadd.f32 0.0, %v844
    %846 = vmatmul.f32.gmra.mxu0 %v692
    %v847 = vpop.f32.mrf.mxu0
    %v848 = vadd.f32 0.0, %v847
    %849 = vmatmul.f32.gmra.mxu0 %v694
    %v850 = vpop.f32.mrf.mxu0
    %v851 = vadd.f32 0.0, %v850
    %852 = vmatmul.f32.gmra.mxu0 %v696
    %v853 = vpop.f32.mrf.mxu0
    %v854 = vadd.f32 0.0, %v853
    %855 = vmatmul.f32.gmra.mxu0 %v698
    %v856 = vpop.f32.mrf.mxu0
    %v857 = vadd.f32 0.0, %v856
    %858 = vmatmul.f32.gmra.mxu0 %v700
    %v859 = vpop.f32.mrf.mxu0
    %v860 = vadd.f32 0.0, %v859
    %861 = vdwg.mxu0
    %862 = vmatpush.msra.mxu0 0.0
    %863 = vmatpush.msra.mxu0 0.0
    %864 = vmatpush.msra.mxu0 0.0
    %865 = vmatpush.msra.mxu0 0.0
    %866 = vmatpush.msra.mxu0 0.0
    %867 = vmatpush.msra.mxu0 0.0
    %868 = vmatpush.msra.mxu0 0.0
    %869 = vmatpush.msra.mxu0 0.0
    %870 = vmatpush.msra.mxu0 0.0
    %871 = vmatpush.msra.mxu0 0.0
    %872 = vmatpush.msra.mxu0 0.0
    %873 = vmatpush.msra.mxu0 0.0
    %874 = vmatpush.msra.mxu0 0.0
    %875 = vmatpush.msra.mxu0 0.0
    %876 = vmatpush.msra.mxu0 %v826
    %877 = vmatpush.msra.mxu0 %v825
    %878 = vmatmul.f32.gmra.mxu0 %v722
    %v879 = vpop.f32.mrf.mxu0
    %v880 = vadd.f32 %v845, %v879
    %881 = vmatmul.f32.gmra.mxu0 %v725
    %v882 = vpop.f32.mrf.mxu0
    %v883 = vadd.f32 %v848, %v882
    %884 = vmatmul.f32.gmra.mxu0 %v728
    %v885 = vpop.f32.mrf.mxu0
    %v886 = vadd.f32 %v851, %v885
    %887 = vmatmul.f32.gmra.mxu0 %v731
    %v888 = vpop.f32.mrf.mxu0
    %v889 = vadd.f32 %v854, %v888
    %890 = vmatmul.f32.gmra.mxu0 %v734
    %v891 = vpop.f32.mrf.mxu0
    %v892 = vadd.f32 %v857, %v891
    %893 = vmatmul.f32.gmra.mxu0 %v737
    %v894 = vpop.f32.mrf.mxu0
    %v895 = vadd.f32 %v860, %v894
    %896 = vdwg.mxu0
    %v897 = vmax.f32 %v792, %v880
    %v898 = vmax.f32 %v795, %v883
    %v899 = vmax.f32 %v798, %v886
    %v900 = vmax.f32 %v801, %v889
    %v901 = vmax.f32 %v804, %v892
    %v902 = vmax.f32 %v807, %v895
    %v909 = vrot.slane %v897, 2
    %v910 = vrot.slane %v897, 4
    %v911 = vrot.slane %v897, 6
    %v912 = vrot.slane %v898, 2
    %v913 = vrot.slane %v898, 4
    %v914 = vrot.slane %v898, 6
    %v915 = vrot.slane %v899, 2
    %v916 = vrot.slane %v899, 4
    %v917 = vrot.slane %v899, 6
    %v918 = vrot.slane %v900, 2
    %v919 = vrot.slane %v900, 4
    %v920 = vrot.slane %v900, 6
    %v921 = vrot.slane %v901, 2
    %v922 = vrot.slane %v901, 4
    %v923 = vrot.slane %v901, 6
    %v924 = vrot.slane %v902, 2
    %v925 = vrot.slane %v902, 4
    %v926 = vrot.slane %v902, 6
    %v945 = vrot.slane %v897, 7
    %v946 = vrot.slane %v945, 2
    %v947 = vrot.slane %v909, 7
    %v948 = vrot.slane %v947, 2
    %v949 = vrot.slane %v910, 7
    %v950 = vrot.slane %v949, 2
    %v951 = vrot.slane %v911, 7
    %v952 = vrot.slane %v951, 2
    %v953 = vrot.slane %v898, 7
    %v954 = vrot.slane %v953, 2
    %v955 = vrot.slane %v912, 7
    %v956 = vrot.slane %v955, 2
    %v957 = vrot.slane %v913, 7
    %v958 = vrot.slane %v957, 2
    %v959 = vrot.slane %v914, 7
    %v960 = vrot.slane %v959, 2
    %v961 = vrot.slane %v899, 7
    %v962 = vrot.slane %v961, 2
    %v963 = vrot.slane %v915, 7
    %v964 = vrot.slane %v963, 2
    %v965 = vrot.slane %v916, 7
    %v966 = vrot.slane %v965, 2
    %v967 = vrot.slane %v917, 7
    %v968 = vrot.slane %v967, 2
    %v969 = vrot.slane %v900, 7
    %v970 = vrot.slane %v969, 2
    %v971 = vrot.slane %v918, 7
    %v972 = vrot.slane %v971, 2
    %v973 = vrot.slane %v919, 7
    %v974 = vrot.slane %v973, 2
    %v975 = vrot.slane %v920, 7
    %v976 = vrot.slane %v975, 2
    %v977 = vrot.slane %v901, 7
    %v978 = vrot.slane %v977, 2
    %v979 = vrot.slane %v921, 7
    %v980 = vrot.slane %v979, 2
    %v981 = vrot.slane %v922, 7
    %v982 = vrot.slane %v981, 2
    %v983 = vrot.slane %v923, 7
    %v984 = vrot.slane %v983, 2
    %v985 = vrot.slane %v902, 7
    %v986 = vrot.slane %v985, 2
    %v987 = vrot.slane %v924, 7
    %v988 = vrot.slane %v987, 2
    %v989 = vrot.slane %v925, 7
    %v990 = vrot.slane %v989, 2
    %v991 = vrot.slane %v926, 7
    %v992 = vrot.slane %v991, 2
    %v1017 = vmax.f32 %v897, %v946
    %v1018 = vmax.f32 %v909, %v948
    %v1019 = vmax.f32 %v910, %v950
    %v1020 = vmax.f32 %v911, %v952
    %v1021 = vmax.f32 %v898, %v954
    %v1022 = vmax.f32 %v912, %v956
    %v1023 = vmax.f32 %v913, %v958
    %v1024 = vmax.f32 %v914, %v960
    %v1025 = vmax.f32 %v899, %v962
    %v1026 = vmax.f32 %v915, %v964
    %v1027 = vmax.f32 %v916, %v966
    %v1028 = vmax.f32 %v917, %v968
    %v1029 = vmax.f32 %v900, %v970
    %v1030 = vmax.f32 %v918, %v972
    %v1031 = vmax.f32 %v919, %v974
    %v1032 = vmax.f32 %v920, %v976
    %v1033 = vmax.f32 %v901, %v978
    %v1034 = vmax.f32 %v921, %v980
    %v1035 = vmax.f32 %v922, %v982
    %v1036 = vmax.f32 %v923, %v984
    %v1037 = vmax.f32 %v902, %v986
    %v1038 = vmax.f32 %v924, %v988
    %v1039 = vmax.f32 %v925, %v990
    %v1040 = vmax.f32 %v926, %v992
    %v1041 = vld [vmem:[%s5] sm:$0xff]
    %v1042 = vld [vmem:[%s5 + $0x8] sm:$0xff]
    %v1043 = vld [vmem:[%s5 + $0x10] sm:$0xff]
    %v1044 = vld [vmem:[%s5 + $0x18] sm:$0xff]
    %v1045 = vld [vmem:[%s5 + $0x20] sm:$0xff]
    %v1046 = vld [vmem:[%s5 + $0x28] sm:$0xff]
    %v1047 = vld [vmem:[%s5 + $0x30] sm:$0xff]
    %v1048 = vld [vmem:[%s5 + $0x38] sm:$0xff]
    %v1049 = vld [vmem:[%s5 + $0x40] sm:$0xff]
    %s1050 = scalar_lea.vmem %s5, 72
    %v1051 = vld [vmem:[%s1050] sm:$0xff]
    %v1052 = vld [vmem:[%s1050 + $0x8] sm:$0xff]
    %v1053 = vld [vmem:[%s1050 + $0x10] sm:$0xff]
    %v1054 = vld [vmem:[%s1050 + $0x18] sm:$0xff]
    %v1055 = vld [vmem:[%s1050 + $0x20] sm:$0xff]
    %v1056 = vld [vmem:[%s1050 + $0x28] sm:$0xff]
    %v1057 = vld [vmem:[%s1050 + $0x30] sm:$0xff]
    %v1058 = vld [vmem:[%s1050 + $0x38] sm:$0xff]
    %v1059 = vld [vmem:[%s1050 + $0x40] sm:$0xff]
    %v1076 = vperm.slane %v1018, 0
    %v1077 = vperm.slane %v1019, 0
    %v1078 = vperm.slane %v1020, 0
    %v1079 = vperm.slane %v1021, 0
    %v1080 = vperm.slane %v1022, 0
    %v1081 = vperm.slane %v1023, 0
    %v1082 = vperm.slane %v1024, 0
    %v1083 = vperm.slane %v1025, 0
    %v1084 = vperm.slane %v1030, 0
    %v1085 = vperm.slane %v1031, 0
    %v1086 = vperm.slane %v1032, 0
    %v1087 = vperm.slane %v1033, 0
    %v1088 = vperm.slane %v1034, 0
    %v1089 = vperm.slane %v1035, 0
    %v1090 = vperm.slane %v1036, 0
    %v1091 = vperm.slane %v1037, 0
    %vm1092 = vcmask 1041409
    %v1093 = vsel %vm1092, %v1077, %v1076
    %vm1094 = vcmask 1042434
    %v1095 = vsel %vm1094, %v1078, %v1093
    %vm1096 = vcmask 1043459
    %v1097 = vsel %vm1096, %v1079, %v1095
    %vm1098 = vcmask 1044484
    %v1099 = vsel %vm1098, %v1080, %v1097
    %vm1100 = vcmask 1045509
    %v1101 = vsel %vm1100, %v1081, %v1099
    %vm1102 = vcmask 1046534
    %v1103 = vsel %vm1102, %v1082, %v1101
    %vm1104 = vcmask 1047559
    %v1105 = vsel %vm1104, %v1083, %v1103
    %v1106 = vsel %vm1092, %v1085, %v1084
    %v1107 = vsel %vm1094, %v1086, %v1106
    %v1108 = vsel %vm1096, %v1087, %v1107
    %v1109 = vsel %vm1098, %v1088, %v1108
    %v1110 = vsel %vm1100, %v1089, %v1109
    %v1111 = vsel %vm1102, %v1090, %v1110
    %v1112 = vsel %vm1104, %v1091, %v1111
    %vm1113 = vcmask 588800
    %v1114 = vsel %vm1113, %v1105, 0
    %v1116 = vsel %vm1113, %v1112, 0
    %1118 = vmatpush.msra.mxu0 0.0
    %1119 = vmatpush.msra.mxu0 0.0
    %1120 = vmatpush.msra.mxu0 0.0
    %1121 = vmatpush.msra.mxu0 0.0
    %1122 = vmatpush.msra.mxu0 0.0
    %1123 = vmatpush.msra.mxu0 0.0
    %1124 = vmatpush.msra.mxu0 0.0
    %1125 = vmatpush.msra.mxu0 %v1059
    %1126 = vmatpush.msra.mxu0 %v1058
    %1127 = vmatpush.msra.mxu0 %v1057
    %1128 = vmatpush.msra.mxu0 %v1056
    %1129 = vmatpush.msra.mxu0 %v1055
    %1130 = vmatpush.msra.mxu0 %v1054
    %1131 = vmatpush.msra.mxu0 %v1053
    %1132 = vmatpush.msra.mxu0 %v1052
    %1133 = vmatpush.msra.mxu0 %v1051
    %1134 = vmatmul.f32.gmra.mxu0 %v1114
    %v1135 = vpop.f32.mrf.mxu0
    %v1136 = vadd.f32 0.0, %v1135
    %1137 = vmatmul.f32.gmra.mxu0 %v1116
    %v1138 = vpop.f32.mrf.mxu0
    %v1139 = vadd.f32 0.0, %v1138
    %1140 = vdwg.mxu0
    %v1143 = vperm.slane %v1017, 0
    %v1144 = vperm.slane %v1029, 0
    %v1145 = vsel %vm1092, %v1076, %v1143
    %v1146 = vsel %vm1094, %v1077, %v1145
    %v1147 = vsel %vm1096, %v1078, %v1146
    %v1148 = vsel %vm1098, %v1079, %v1147
    %v1149 = vsel %vm1100, %v1080, %v1148
    %v1150 = vsel %vm1102, %v1081, %v1149
    %v1151 = vsel %vm1104, %v1082, %v1150
    %v1152 = vsel %vm1092, %v1084, %v1144
    %v1153 = vsel %vm1094, %v1085, %v1152
    %v1154 = vsel %vm1096, %v1086, %v1153
    %v1155 = vsel %vm1098, %v1087, %v1154
    %v1156 = vsel %vm1100, %v1088, %v1155
    %v1157 = vsel %vm1102, %v1089, %v1156
    %v1158 = vsel %vm1104, %v1090, %v1157
    %v1159 = vsel %vm1113, %v1151, 0
    %v1161 = vsel %vm1113, %v1158, 0
    %1163 = vmatpush.msra.mxu0 0.0
    %1164 = vmatpush.msra.mxu0 0.0
    %1165 = vmatpush.msra.mxu0 0.0
    %1166 = vmatpush.msra.mxu0 0.0
    %1167 = vmatpush.msra.mxu0 0.0
    %1168 = vmatpush.msra.mxu0 0.0
    %1169 = vmatpush.msra.mxu0 0.0
    %1170 = vmatpush.msra.mxu0 %v1049
    %1171 = vmatpush.msra.mxu0 %v1048
    %1172 = vmatpush.msra.mxu0 %v1047
    %1173 = vmatpush.msra.mxu0 %v1046
    %1174 = vmatpush.msra.mxu0 %v1045
    %1175 = vmatpush.msra.mxu0 %v1044
    %1176 = vmatpush.msra.mxu0 %v1043
    %1177 = vmatpush.msra.mxu0 %v1042
    %1178 = vmatpush.msra.mxu0 %v1041
    %1179 = vmatmul.f32.gmra.mxu0 %v1159
    %v1180 = vpop.f32.mrf.mxu0
    %v1181 = vadd.f32 %v1136, %v1180
    %1182 = vmatmul.f32.gmra.mxu0 %v1161
    %v1183 = vpop.f32.mrf.mxu0
    %v1184 = vadd.f32 %v1139, %v1183
    %1185 = vdwg.mxu0
    %s1186 = scalar_lea.vmem %s5, 144
    %v1187 = vld [vmem:[%s1186] sm:$0xff]
    %v1188 = vld [vmem:[%s1186 + $0x8] sm:$0xff]
    %v1189 = vld [vmem:[%s1186 + $0x10] sm:$0xff]
    %v1190 = vld [vmem:[%s1186 + $0x18] sm:$0xff]
    %v1191 = vld [vmem:[%s1186 + $0x20] sm:$0xff]
    %v1192 = vld [vmem:[%s1186 + $0x28] sm:$0xff]
    %v1193 = vld [vmem:[%s1186 + $0x30] sm:$0xff]
    %v1194 = vld [vmem:[%s1186 + $0x38] sm:$0xff]
    %v1195 = vld [vmem:[%s1186 + $0x40] sm:$0xff]
    %v1198 = vperm.slane %v1026, 0
    %v1199 = vperm.slane %v1038, 0
    %v1200 = vsel %vm1092, %v1078, %v1077
    %v1201 = vsel %vm1094, %v1079, %v1200
    %v1202 = vsel %vm1096, %v1080, %v1201
    %v1203 = vsel %vm1098, %v1081, %v1202
    %v1204 = vsel %vm1100, %v1082, %v1203
    %v1205 = vsel %vm1102, %v1083, %v1204
    %v1206 = vsel %vm1104, %v1198, %v1205
    %v1207 = vsel %vm1092, %v1086, %v1085
    %v1208 = vsel %vm1094, %v1087, %v1207
    %v1209 = vsel %vm1096, %v1088, %v1208
    %v1210 = vsel %vm1098, %v1089, %v1209
    %v1211 = vsel %vm1100, %v1090, %v1210
    %v1212 = vsel %vm1102, %v1091, %v1211
    %v1213 = vsel %vm1104, %v1199, %v1212
    %v1214 = vsel %vm1113, %v1206, 0
    %v1216 = vsel %vm1113, %v1213, 0
    %1218 = vmatpush.msra.mxu0 0.0
    %1219 = vmatpush.msra.mxu0 0.0
    %1220 = vmatpush.msra.mxu0 0.0
    %1221 = vmatpush.msra.mxu0 0.0
    %1222 = vmatpush.msra.mxu0 0.0
    %1223 = vmatpush.msra.mxu0 0.0
    %1224 = vmatpush.msra.mxu0 0.0
    %1225 = vmatpush.msra.mxu0 %v1195
    %1226 = vmatpush.msra.mxu0 %v1194
    %1227 = vmatpush.msra.mxu0 %v1193
    %1228 = vmatpush.msra.mxu0 %v1192
    %1229 = vmatpush.msra.mxu0 %v1191
    %1230 = vmatpush.msra.mxu0 %v1190
    %1231 = vmatpush.msra.mxu0 %v1189
    %1232 = vmatpush.msra.mxu0 %v1188
    %1233 = vmatpush.msra.mxu0 %v1187
    %1234 = vmatmul.f32.gmra.mxu0 %v1214
    %v1235 = vpop.f32.mrf.mxu0
    %v1236 = vadd.f32 0.0, %v1235
    %1237 = vmatmul.f32.gmra.mxu0 %v1216
    %v1238 = vpop.f32.mrf.mxu0
    %v1239 = vadd.f32 0.0, %v1238
    %1240 = vdwg.mxu0
    %v1241 = vadd.f32 %v1181, %v1236
    %v1242 = vadd.f32 %v1184, %v1239
    %s1243 = scalar_lea.vmem %s5, 216
    %v1244 = vld [vmem:[%s1243] sm:$0xff]
    %v1245 = vld [vmem:[%s1243 + $0x8] sm:$0xff]
    %v1246 = vld [vmem:[%s1243 + $0x10] sm:$0xff]
    %v1247 = vld [vmem:[%s1243 + $0x18] sm:$0xff]
    %v1248 = vld [vmem:[%s1243 + $0x20] sm:$0xff]
    %v1249 = vld [vmem:[%s1243 + $0x28] sm:$0xff]
    %v1250 = vld [vmem:[%s1243 + $0x30] sm:$0xff]
    %v1251 = vld [vmem:[%s1243 + $0x38] sm:$0xff]
    %v1252 = vld [vmem:[%s1243 + $0x40] sm:$0xff]
    %v1255 = vperm.slane %v1027, 0
    %v1256 = vperm.slane %v1039, 0
    %v1257 = vsel %vm1092, %v1079, %v1078
    %v1258 = vsel %vm1094, %v1080, %v1257
    %v1259 = vsel %vm1096, %v1081, %v1258
    %v1260 = vsel %vm1098, %v1082, %v1259
    %v1261 = vsel %vm1100, %v1083, %v1260
    %v1262 = vsel %vm1102, %v1198, %v1261
    %v1263 = vsel %vm1104, %v1255, %v1262
    %v1264 = vsel %vm1092, %v1087, %v1086
    %v1265 = vsel %vm1094, %v1088, %v1264
    %v1266 = vsel %vm1096, %v1089, %v1265
    %v1267 = vsel %vm1098, %v1090, %v1266
    %v1268 = vsel %vm1100, %v1091, %v1267
    %v1269 = vsel %vm1102, %v1199, %v1268
    %v1270 = vsel %vm1104, %v1256, %v1269
    %v1271 = vsel %vm1113, %v1263, 0
    %v1273 = vsel %vm1113, %v1270, 0
    %1275 = vmatpush.msra.mxu0 0.0
    %1276 = vmatpush.msra.mxu0 0.0
    %1277 = vmatpush.msra.mxu0 0.0
    %1278 = vmatpush.msra.mxu0 0.0
    %1279 = vmatpush.msra.mxu0 0.0
    %1280 = vmatpush.msra.mxu0 0.0
    %1281 = vmatpush.msra.mxu0 0.0
    %1282 = vmatpush.msra.mxu0 %v1252
    %1283 = vmatpush.msra.mxu0 %v1251
    %1284 = vmatpush.msra.mxu0 %v1250
    %1285 = vmatpush.msra.mxu0 %v1249
    %1286 = vmatpush.msra.mxu0 %v1248
    %1287 = vmatpush.msra.mxu0 %v1247
    %1288 = vmatpush.msra.mxu0 %v1246
    %1289 = vmatpush.msra.mxu0 %v1245
    %1290 = vmatpush.msra.mxu0 %v1244
    %1291 = vmatmul.f32.gmra.mxu0 %v1271
    %v1292 = vpop.f32.mrf.mxu0
    %v1293 = vadd.f32 0.0, %v1292
    %1294 = vmatmul.f32.gmra.mxu0 %v1273
    %v1295 = vpop.f32.mrf.mxu0
    %v1296 = vadd.f32 0.0, %v1295
    %1297 = vdwg.mxu0
    %v1298 = vadd.f32 %v1241, %v1293
    %v1299 = vadd.f32 %v1242, %v1296
    %s1300 = scalar_lea.vmem %s5, 288
    %v1301 = vld [vmem:[%s1300] sm:$0xff]
    %v1302 = vld [vmem:[%s1300 + $0x8] sm:$0xff]
    %v1303 = vld [vmem:[%s1300 + $0x10] sm:$0xff]
    %v1304 = vld [vmem:[%s1300 + $0x18] sm:$0xff]
    %v1305 = vld [vmem:[%s1300 + $0x20] sm:$0xff]
    %v1306 = vld [vmem:[%s1300 + $0x28] sm:$0xff]
    %v1307 = vld [vmem:[%s1300 + $0x30] sm:$0xff]
    %v1308 = vld [vmem:[%s1300 + $0x38] sm:$0xff]
    %v1309 = vld [vmem:[%s1300 + $0x40] sm:$0xff]
    %v1312 = vperm.slane %v1028, 0
    %v1313 = vperm.slane %v1040, 0
    %v1314 = vsel %vm1092, %v1080, %v1079
    %v1315 = vsel %vm1094, %v1081, %v1314
    %v1316 = vsel %vm1096, %v1082, %v1315
    %v1317 = vsel %vm1098, %v1083, %v1316
    %v1318 = vsel %vm1100, %v1198, %v1317
    %v1319 = vsel %vm1102, %v1255, %v1318
    %v1320 = vsel %vm1104, %v1312, %v1319
    %v1321 = vsel %vm1092, %v1088, %v1087
    %v1322 = vsel %vm1094, %v1089, %v1321
    %v1323 = vsel %vm1096, %v1090, %v1322
    %v1324 = vsel %vm1098, %v1091, %v1323
    %v1325 = vsel %vm1100, %v1199, %v1324
    %v1326 = vsel %vm1102, %v1256, %v1325
    %v1327 = vsel %vm1104, %v1313, %v1326
    %v1328 = vsel %vm1113, %v1320, 0
    %v1330 = vsel %vm1113, %v1327, 0
    %1332 = vmatpush.msra.mxu0 0.0
    %1333 = vmatpush.msra.mxu0 0.0
    %1334 = vmatpush.msra.mxu0 0.0
    %1335 = vmatpush.msra.mxu0 0.0
    %1336 = vmatpush.msra.mxu0 0.0
    %1337 = vmatpush.msra.mxu0 0.0
    %1338 = vmatpush.msra.mxu0 0.0
    %1339 = vmatpush.msra.mxu0 %v1309
    %1340 = vmatpush.msra.mxu0 %v1308
    %1341 = vmatpush.msra.mxu0 %v1307
    %1342 = vmatpush.msra.mxu0 %v1306
    %1343 = vmatpush.msra.mxu0 %v1305
    %1344 = vmatpush.msra.mxu0 %v1304
    %1345 = vmatpush.msra.mxu0 %v1303
    %1346 = vmatpush.msra.mxu0 %v1302
    %1347 = vmatpush.msra.mxu0 %v1301
    %1348 = vmatmul.f32.gmra.mxu0 %v1328
    %v1349 = vpop.f32.mrf.mxu0
    %v1350 = vadd.f32 0.0, %v1349
    %1351 = vmatmul.f32.gmra.mxu0 %v1330
    %v1352 = vpop.f32.mrf.mxu0
    %v1353 = vadd.f32 0.0, %v1352
    %1354 = vdwg.mxu0
    %v1355 = vadd.f32 %v1298, %v1350
    %v1356 = vadd.f32 %v1299, %v1353
    %v1357 = vld [vmem:[%s6] sm:$0x1]
    %v1359 = vperm.slane %v1357, 0
    %v1361 = vadd.f32 %v1355, %v1359
    %v1362 = vadd.f32 %v1356, %v1359
    %v1363 = vmax.f32 %v1361, 0.0
    %v1364 = vmax.f32 %v1362, 0.0
    %v1365 = vld [vmem:[%s7] sm:$0xff]
    %v1366 = vld [vmem:[%s7 + $0x8] sm:$0xff]
    %v1367 = vld [vmem:[%s7 + $0x10] sm:$0xff]
    %v1368 = vld [vmem:[%s7 + $0x18] sm:$0xff]
    %v1369 = vld [vmem:[%s7 + $0x20] sm:$0xff]
    %v1370 = vld [vmem:[%s7 + $0x28] sm:$0xff]
    %v1371 = vld [vmem:[%s7 + $0x30] sm:$0xff]
    %v1372 = vld [vmem:[%s7 + $0x38] sm:$0xff]
    %v1373 = vld [vmem:[%s7 + $0x40] sm:$0xff]
    %v1374 = vld [vmem:[%s7 + $0x48] sm:$0xff]
    %v1375 = vld [vmem:[%s7 + $0x50] sm:$0xff]
    %v1376 = vld [vmem:[%s7 + $0x58] sm:$0xff]
    %v1377 = vld [vmem:[%s7 + $0x60] sm:$0xff]
    %v1378 = vld [vmem:[%s7 + $0x68] sm:$0xff]
    %v1379 = vld [vmem:[%s7 + $0x70] sm:$0xff]
    %v1380 = vld [vmem:[%s7 + $0x78] sm:$0xff]
    %1381 = vmatpush.msra.mxu0 %v1380
    %1382 = vmatpush.msra.mxu0 %v1379
    %1383 = vmatpush.msra.mxu0 %v1378
    %1384 = vmatpush.msra.mxu0 %v1377
    %1385 = vmatpush.msra.mxu0 %v1376
    %1386 = vmatpush.msra.mxu0 %v1375
    %1387 = vmatpush.msra.mxu0 %v1374
    %1388 = vmatpush.msra.mxu0 %v1373
    %1389 = vmatpush.msra.mxu0 %v1372
    %1390 = vmatpush.msra.mxu0 %v1371
    %1391 = vmatpush.msra.mxu0 %v1370
    %1392 = vmatpush.msra.mxu0 %v1369
    %1393 = vmatpush.msra.mxu0 %v1368
    %1394 = vmatpush.msra.mxu0 %v1367
    %1395 = vmatpush.msra.mxu0 %v1366
    %1396 = vmatpush.msra.mxu0 %v1365
    %1397 = vmatmul.f32.gmra.mxu0 %v1363
    %v1398 = vpop.f32.mrf.mxu0
    %v1399 = vadd.f32 0.0, %v1398
    %1400 = vmatmul.f32.gmra.mxu0 %v1364
    %v1401 = vpop.f32.mrf.mxu0
    %v1402 = vadd.f32 0.0, %v1401
    %1403 = vdwg.mxu0
    %v1404 = vld [vmem:[%s8] sm:$0xff]
    %v1405 = vld [vmem:[%s8 + $0x8] sm:$0xff]
    %v1406 = vld [vmem:[%s8 + $0x10] sm:$0xff]
    %v1407 = vld [vmem:[%s8 + $0x18] sm:$0xff]
    %v1408 = vld [vmem:[%s8 + $0x20] sm:$0xff]
    %v1409 = vld [vmem:[%s8 + $0x28] sm:$0xff]
    %v1410 = vld [vmem:[%s8 + $0x30] sm:$0xff]
    %v1411 = vld [vmem:[%s8 + $0x38] sm:$0xff]
    %v1412 = vld [vmem:[%s8 + $0x40] sm:$0xff]
    %v1413 = vld [vmem:[%s8 + $0x48] sm:$0xff]
    %v1414 = vld [vmem:[%s8 + $0x50] sm:$0xff]
    %v1415 = vld [vmem:[%s8 + $0x58] sm:$0xff]
    %v1416 = vld [vmem:[%s8 + $0x60] sm:$0xff]
    %v1417 = vld [vmem:[%s8 + $0x68] sm:$0xff]
    %v1418 = vld [vmem:[%s8 + $0x70] sm:$0xff]
    %v1419 = vld [vmem:[%s8 + $0x78] sm:$0xff]
    %1420 = vmatpush.msra.mxu0 %v1419
    %1421 = vmatpush.msra.mxu0 %v1418
    %1422 = vmatpush.msra.mxu0 %v1417
    %1423 = vmatpush.msra.mxu0 %v1416
    %1424 = vmatpush.msra.mxu0 %v1415
    %1425 = vmatpush.msra.mxu0 %v1414
    %1426 = vmatpush.msra.mxu0 %v1413
    %1427 = vmatpush.msra.mxu0 %v1412
    %1428 = vmatpush.msra.mxu0 %v1411
    %1429 = vmatpush.msra.mxu0 %v1410
    %1430 = vmatpush.msra.mxu0 %v1409
    %1431 = vmatpush.msra.mxu0 %v1408
    %1432 = vmatpush.msra.mxu0 %v1407
    %1433 = vmatpush.msra.mxu0 %v1406
    %1434 = vmatpush.msra.mxu0 %v1405
    %1435 = vmatpush.msra.mxu0 %v1404
    %1436 = vmatmul.f32.gmra.mxu0 %v1363
    %v1437 = vpop.f32.mrf.mxu0
    %v1438 = vadd.f32 0.0, %v1437
    %1439 = vmatmul.f32.gmra.mxu0 %v1364
    %v1440 = vpop.f32.mrf.mxu0
    %v1441 = vadd.f32 0.0, %v1440
    %1442 = vdwg.mxu0
    %v1443 = vmax.f32 %v1399, %v1438
    %v1444 = vmax.f32 %v1402, %v1441
    %v1447 = vrot.slane %v1443, 2
    %v1448 = vrot.slane %v1443, 4
    %v1449 = vrot.slane %v1443, 6
    %v1450 = vrot.slane %v1444, 2
    %v1451 = vrot.slane %v1444, 4
    %v1452 = vrot.slane %v1444, 6
    %v1459 = vrot.slane %v1443, 7
    %v1460 = vrot.slane %v1459, 2
    %v1461 = vrot.slane %v1447, 7
    %v1462 = vrot.slane %v1461, 2
    %v1463 = vrot.slane %v1448, 7
    %v1464 = vrot.slane %v1463, 2
    %v1465 = vrot.slane %v1449, 7
    %v1466 = vrot.slane %v1465, 2
    %v1467 = vrot.slane %v1444, 7
    %v1468 = vrot.slane %v1467, 2
    %v1469 = vrot.slane %v1450, 7
    %v1470 = vrot.slane %v1469, 2
    %v1471 = vrot.slane %v1451, 7
    %v1472 = vrot.slane %v1471, 2
    %v1473 = vrot.slane %v1452, 7
    %v1474 = vrot.slane %v1473, 2
    %v1483 = vmax.f32 %v1443, %v1460
    %v1484 = vmax.f32 %v1447, %v1462
    %v1485 = vmax.f32 %v1448, %v1464
    %v1486 = vmax.f32 %v1449, %v1466
    %v1487 = vmax.f32 %v1444, %v1468
    %v1488 = vmax.f32 %v1450, %v1470
    %v1489 = vmax.f32 %v1451, %v1472
    %v1490 = vmax.f32 %v1452, %v1474
    %v1491 = vld [vmem:[%s9] sm:$0xff]
    %v1492 = vld [vmem:[%s9 + $0x8] sm:$0xff]
    %v1493 = vld [vmem:[%s9 + $0x10] sm:$0xff]
    %v1494 = vld [vmem:[%s9 + $0x18] sm:$0xff]
    %v1495 = vld [vmem:[%s9 + $0x20] sm:$0xff]
    %v1496 = vld [vmem:[%s9 + $0x28] sm:$0xff]
    %v1497 = vld [vmem:[%s9 + $0x30] sm:$0xff]
    %v1498 = vld [vmem:[%s9 + $0x38] sm:$0xff]
    %v1499 = vld [vmem:[%s9 + $0x40] sm:$0xff]
    %v1500 = vld [vmem:[%s9 + $0x48] sm:$0xff]
    %v1501 = vld [vmem:[%s9 + $0x50] sm:$0xff]
    %v1502 = vld [vmem:[%s9 + $0x58] sm:$0xff]
    %v1503 = vld [vmem:[%s9 + $0x60] sm:$0xff]
    %v1504 = vld [vmem:[%s9 + $0x68] sm:$0xff]
    %v1505 = vld [vmem:[%s9 + $0x70] sm:$0xff]
    %v1506 = vld [vmem:[%s9 + $0x78] sm:$0xff]
    %v1509 = vperm.slane %v1484, 0
    %v1510 = vperm.slane %v1488, 0
    %v1511 = vsel %vm1092, %v1510, %v1509
    %vm1512 = vcmask 523264
    %v1513 = vsel %vm1512, %v1511, 0
    %1515 = vmatpush.msra.mxu0 0.0
    %1516 = vmatpush.msra.mxu0 0.0
    %1517 = vmatpush.msra.mxu0 0.0
    %1518 = vmatpush.msra.mxu0 0.0
    %1519 = vmatpush.msra.mxu0 0.0
    %1520 = vmatpush.msra.mxu0 0.0
    %1521 = vmatpush.msra.mxu0 0.0
    %1522 = vmatpush.msra.mxu0 0.0
    %1523 = vmatpush.msra.mxu0 %v1506
    %1524 = vmatpush.msra.mxu0 %v1505
    %1525 = vmatpush.msra.mxu0 %v1504
    %1526 = vmatpush.msra.mxu0 %v1503
    %1527 = vmatpush.msra.mxu0 %v1502
    %1528 = vmatpush.msra.mxu0 %v1501
    %1529 = vmatpush.msra.mxu0 %v1500
    %1530 = vmatpush.msra.mxu0 %v1499
    %1531 = vmatmul.f32.gmra.mxu0 %v1513
    %v1532 = vpop.f32.mrf.mxu0
    %v1533 = vadd.f32 0.0, %v1532
    %1534 = vdwg.mxu0
    %v1537 = vperm.slane %v1483, 0
    %v1538 = vperm.slane %v1487, 0
    %v1539 = vsel %vm1092, %v1538, %v1537
    %v1540 = vsel %vm1512, %v1539, 0
    %1542 = vmatpush.msra.mxu0 0.0
    %1543 = vmatpush.msra.mxu0 0.0
    %1544 = vmatpush.msra.mxu0 0.0
    %1545 = vmatpush.msra.mxu0 0.0
    %1546 = vmatpush.msra.mxu0 0.0
    %1547 = vmatpush.msra.mxu0 0.0
    %1548 = vmatpush.msra.mxu0 0.0
    %1549 = vmatpush.msra.mxu0 0.0
    %1550 = vmatpush.msra.mxu0 %v1498
    %1551 = vmatpush.msra.mxu0 %v1497
    %1552 = vmatpush.msra.mxu0 %v1496
    %1553 = vmatpush.msra.mxu0 %v1495
    %1554 = vmatpush.msra.mxu0 %v1494
    %1555 = vmatpush.msra.mxu0 %v1493
    %1556 = vmatpush.msra.mxu0 %v1492
    %1557 = vmatpush.msra.mxu0 %v1491
    %1558 = vmatmul.f32.gmra.mxu0 %v1540
    %v1559 = vpop.f32.mrf.mxu0
    %v1560 = vadd.f32 %v1533, %v1559
    %1561 = vdwg.mxu0
    %v1562 = vld [vmem:[%s9 + $0x80] sm:$0xff]
    %v1563 = vld [vmem:[%s9 + $0x88] sm:$0xff]
    %v1564 = vld [vmem:[%s9 + $0x90] sm:$0xff]
    %v1565 = vld [vmem:[%s9 + $0x98] sm:$0xff]
    %v1566 = vld [vmem:[%s9 + $0xa0] sm:$0xff]
    %v1567 = vld [vmem:[%s9 + $0xa8] sm:$0xff]
    %v1568 = vld [vmem:[%s9 + $0xb0] sm:$0xff]
    %v1569 = vld [vmem:[%s9 + $0xb8] sm:$0xff]
    %v1572 = vperm.slane %v1485, 0
    %v1573 = vperm.slane %v1489, 0
    %v1574 = vsel %vm1092, %v1573, %v1572
    %v1575 = vsel %vm1512, %v1574, 0
    %1577 = vmatpush.msra.mxu0 0.0
    %1578 = vmatpush.msra.mxu0 0.0
    %1579 = vmatpush.msra.mxu0 0.0
    %1580 = vmatpush.msra.mxu0 0.0
    %1581 = vmatpush.msra.mxu0 0.0
    %1582 = vmatpush.msra.mxu0 0.0
    %1583 = vmatpush.msra.mxu0 0.0
    %1584 = vmatpush.msra.mxu0 0.0
    %1585 = vmatpush.msra.mxu0 %v1569
    %1586 = vmatpush.msra.mxu0 %v1568
    %1587 = vmatpush.msra.mxu0 %v1567
    %1588 = vmatpush.msra.mxu0 %v1566
    %1589 = vmatpush.msra.mxu0 %v1565
    %1590 = vmatpush.msra.mxu0 %v1564
    %1591 = vmatpush.msra.mxu0 %v1563
    %1592 = vmatpush.msra.mxu0 %v1562
    %1593 = vmatmul.f32.gmra.mxu0 %v1575
    %v1594 = vpop.f32.mrf.mxu0
    %v1595 = vadd.f32 0.0, %v1594
    %1596 = vdwg.mxu0
    %v1597 = vadd.f32 %v1560, %v1595
    %v1598 = vld [vmem:[%s9 + $0xc0] sm:$0xff]
    %v1599 = vld [vmem:[%s9 + $0xc8] sm:$0xff]
    %v1600 = vld [vmem:[%s9 + $0xd0] sm:$0xff]
    %v1601 = vld [vmem:[%s9 + $0xd8] sm:$0xff]
    %v1602 = vld [vmem:[%s9 + $0xe0] sm:$0xff]
    %v1603 = vld [vmem:[%s9 + $0xe8] sm:$0xff]
    %v1604 = vld [vmem:[%s9 + $0xf0] sm:$0xff]
    %v1605 = vld [vmem:[%s9 + $0xf8] sm:$0xff]
    %v1608 = vperm.slane %v1486, 0
    %v1609 = vperm.slane %v1490, 0
    %v1610 = vsel %vm1092, %v1609, %v1608
    %v1611 = vsel %vm1512, %v1610, 0
    %1613 = vmatpush.msra.mxu0 0.0
    %1614 = vmatpush.msra.mxu0 0.0
    %1615 = vmatpush.msra.mxu0 0.0
    %1616 = vmatpush.msra.mxu0 0.0
    %1617 = vmatpush.msra.mxu0 0.0
    %1618 = vmatpush.msra.mxu0 0.0
    %1619 = vmatpush.msra.mxu0 0.0
    %1620 = vmatpush.msra.mxu0 0.0
    %1621 = vmatpush.msra.mxu0 %v1605
    %1622 = vmatpush.msra.mxu0 %v1604
    %1623 = vmatpush.msra.mxu0 %v1603
    %1624 = vmatpush.msra.mxu0 %v1602
    %1625 = vmatpush.msra.mxu0 %v1601
    %1626 = vmatpush.msra.mxu0 %v1600
    %1627 = vmatpush.msra.mxu0 %v1599
    %1628 = vmatpush.msra.mxu0 %v1598
    %1629 = vmatmul.f32.gmra.mxu0 %v1611
    %v1630 = vpop.f32.mrf.mxu0
    %v1631 = vadd.f32 0.0, %v1630
    %1632 = vdwg.mxu0
    %v1633 = vadd.f32 %v1597, %v1631
    %v1634 = vld [vmem:[%s10] sm:$0x1]
    %v1636 = vperm.slane %v1634, 0
    %v1638 = vadd.f32 %v1633, %v1636
    %v1639 = vmax.f32 %v1638, 0.0
    %v1640 = vld [vmem:[%s11] sm:$0xff]
    %v1641 = vld [vmem:[%s11 + $0x8] sm:$0xff]
    %v1642 = vld [vmem:[%s11 + $0x10] sm:$0xff]
    %v1643 = vld [vmem:[%s11 + $0x18] sm:$0xff]
    %v1644 = vld [vmem:[%s11 + $0x20] sm:$0xff]
    %v1645 = vld [vmem:[%s11 + $0x28] sm:$0xff]
    %v1646 = vld [vmem:[%s11 + $0x30] sm:$0xff]
    %v1647 = vld [vmem:[%s11 + $0x38] sm:$0xff]
    %v1648 = vld [vmem:[%s11 + $0x40] sm:$0xff]
    %v1649 = vld [vmem:[%s11 + $0x48] sm:$0xff]
    %v1650 = vld [vmem:[%s11 + $0x50] sm:$0xff]
    %v1651 = vld [vmem:[%s11 + $0x58] sm:$0xff]
    %v1652 = vld [vmem:[%s11 + $0x60] sm:$0xff]
    %v1653 = vld [vmem:[%s11 + $0x68] sm:$0xff]
    %v1654 = vld [vmem:[%s11 + $0x70] sm:$0xff]
    %v1655 = vld [vmem:[%s12] sm:$0x1]
    %v1657 = vperm.slane %v1655, 0
    %vm1659 = vcmask 982016
    %v1661 = vsel %vm1659, %v1639, 0
    %1663 = vmatpush.msra.mxu0 0.0
    %1664 = vmatpush.msra.mxu0 %v1654
    %1665 = vmatpush.msra.mxu0 %v1653
    %1666 = vmatpush.msra.mxu0 %v1652
    %1667 = vmatpush.msra.mxu0 %v1651
    %1668 = vmatpush.msra.mxu0 %v1650
    %1669 = vmatpush.msra.mxu0 %v1649
    %1670 = vmatpush.msra.mxu0 %v1648
    %1671 = vmatpush.msra.mxu0 %v1647
    %1672 = vmatpush.msra.mxu0 %v1646
    %1673 = vmatpush.msra.mxu0 %v1645
    %1674 = vmatpush.msra.mxu0 %v1644
    %1675 = vmatpush.msra.mxu0 %v1643
    %1676 = vmatpush.msra.mxu0 %v1642
    %1677 = vmatpush.msra.mxu0 %v1641
    %1678 = vmatpush.msra.mxu0 %v1640
    %1679 = vmatmul.f32.gmra.mxu0 %v1661
    %v1680 = vpop.f32.mrf.mxu0
    %v1681 = vadd.f32 %v1657, %v1680
    %1682 = vdwg.mxu0
    %v1683 = vmax.f32 %v1681, 0.0
    %v1684 = vld [vmem:[%s13] sm:$0xff]
    %v1685 = vld [vmem:[%s13 + $0x8] sm:$0xff]
    %v1686 = vld [vmem:[%s13 + $0x10] sm:$0xff]
    %v1687 = vld [vmem:[%s13 + $0x18] sm:$0xff]
    %v1688 = vld [vmem:[%s13 + $0x20] sm:$0xff]
    %v1689 = vld [vmem:[%s13 + $0x28] sm:$0xff]
    %v1690 = vld [vmem:[%s13 + $0x30] sm:$0xff]
    %v1691 = vld [vmem:[%s13 + $0x38] sm:$0xff]
    %v1692 = vld [vmem:[%s13 + $0x40] sm:$0xff]
    %v1693 = vld [vmem:[%s13 + $0x48] sm:$0xff]
    %v1694 = vld [vmem:[%s13 + $0x50] sm:$0xf]
    %v1695 = vld [vmem:[%s14] sm:$0x1]
    %v1697 = vperm.slane %v1695, 0
    %vm1699 = vcmask 687104
    %v1701 = vsel %vm1699, %v1683, 0
    %v1704 = vsel %vm136, %v1694, 0
    %1706 = vmatpush.msra.mxu0 0.0
    %1707 = vmatpush.msra.mxu0 0.0
    %1708 = vmatpush.msra.mxu0 0.0
    %1709 = vmatpush.msra.mxu0 0.0
    %1710 = vmatpush.msra.mxu0 0.0
    %1711 = vmatpush.msra.mxu0 %v1704
    %1712 = vmatpush.msra.mxu0 %v1693
    %1713 = vmatpush.msra.mxu0 %v1692
    %1714 = vmatpush.msra.mxu0 %v1691
    %1715 = vmatpush.msra.mxu0 %v1690
    %1716 = vmatpush.msra.mxu0 %v1689
    %1717 = vmatpush.msra.mxu0 %v1688
    %1718 = vmatpush.msra.mxu0 %v1687
    %1719 = vmatpush.msra.mxu0 %v1686
    %1720 = vmatpush.msra.mxu0 %v1685
    %1721 = vmatpush.msra.mxu0 %v1684
    %1722 = vmatmul.f32.gmra.mxu0 %v1701
    %v1723 = vpop.f32.mrf.mxu0
    %v1724 = vadd.f32 %v1697, %v1723
    %1725 = vdwg.mxu0
    %vm1726 = vcmask 74752
    %1727 = vst.msk [vmem:[#allocation5] sm:$0x3] %vm1726, %v1724
    // Predicated region
    $region66: #{cnn_forward.1} parent=1 // pred_check
      _
    $region67: #{cnn_forward.1} parent=1 // pred_check_branch
      %1729 = sbr.rel (0) target = $region69
    $region68: #{cnn_forward.1} parent=1 // pred_region
      %1731 = vsyncadd [#allocation4], 0
      %s1733 = sshll.u32 [#allocation5], 4
      %s1734 = int_to_ptr.vmem [resolvable:$true] %s1733
      %s1735 = sshll.u32 %s15, 4
      %s1736 = int_to_ptr.hbm [resolvable:$true] %s1735
      %1738 = dma.vmem_to_hbm [thread:$0]  %s1734, 32, %s1736, [#allocation4]
    $region69: #{cnn_forward.1} parent=1 // pred_fallthru
      _
    // Predicated region
    $region70: #{cnn_forward.1} parent=1 // pred_check
      _
    $region71: #{cnn_forward.1} parent=1 // pred_check_branch
      %1740 = sbr.rel (0) target = $region73
    $region72: #{cnn_forward.1} parent=1 // pred_region
      %1742 = dma.done [#allocation4], 32
    $region73: #{cnn_forward.1} parent=1 // pred_fallthru
      _
    %1743 = vsyncpa [#allocation3], 1
    %1744 = vsyncpa [#allocation4], 1

</llo_original>
